<compile_context>
chip_gen: v5e
topology: v5e:2x2
jax: 0.10.0
libtpu: 0.0.40
codegen_flags: <defaults>
</compile_context>

<pallas_src>
import functools

import jax
import jax.numpy as jnp
from jax.experimental import pallas as pl
from jax.experimental.pallas import tpu as pltpu


def _round_up(a, b):
    return (a + b - 1) // b * b


def deup_cat_kernel(x_ref, prev_ref, w1_ref, b1_ref, w23_ref, w3a_ref, b_ref,
                    out_ref):
    # x_ref:    (TM, Cin)       pixel tile of x (channels-last)
    # prev_ref: (TM, 8*Cout)    matching pixel tile of prev, column = o*Cout + c
    # w1_ref:   (Cin, Cout)     conv1 weight
    # b1_ref:   (1, Cout)       conv1 bias
    # w23_ref:  (Cout, 8*Cout)  folded ConvTranspose3d(k=2,s=2) @ conv3-up-half
    # w3a_ref:  (Cout, Cout)    conv3 prev-half weight
    # b_ref:    (1, 8*Cout)     folded bias (b2 @ W3b + b3), tiled per offset
    # out_ref:  (TM, 8*Cout)
    cout = w1_ref.shape[1]

    # conv1 (1x1x1): channel matmul, computed exactly once per pixel tile.
    x1 = jnp.dot(x_ref[...], w1_ref[...],
                 preferred_element_type=jnp.float32) + b1_ref[...]

    # conv2 (k=2,s=2 transposed) fused with conv3-up-half: one lane-dense matmul
    # with N = 8*Cout; the folded bias is added into the same accumulator.
    acc = jnp.dot(x1.astype(w23_ref.dtype), w23_ref[...],
                  preferred_element_type=jnp.float32) + b_ref[...]

    # conv3 prev-half: block-diagonal application of W3a to the 8 offset blocks.
    prev = prev_ref[...]
    w3a = w3a_ref[...]
    prev_out = jnp.concatenate(
        [jnp.dot(prev[:, o * cout:(o + 1) * cout], w3a,
                 preferred_element_type=jnp.float32) for o in range(8)],
        axis=-1)

    out_ref[...] = (acc + prev_out).astype(out_ref.dtype)


def deup_cat_pallas(x_flat, prev_all, w1, b1, w23, w3a, b_all, *, tm):
    Mp, Cin = x_flat.shape
    Cout = w1.shape[1]
    C8 = 8 * Cout
    assert Mp % tm == 0 and tm % 8 == 0

    grid = (Mp // tm,)  # single pixel-tile axis; megacore-friendly on v7x
    return pl.pallas_call(
        deup_cat_kernel,
        out_shape=jax.ShapeDtypeStruct((Mp, C8), jnp.float32),
        grid_spec=pltpu.PrefetchScalarGridSpec(
            num_scalar_prefetch=0,
            grid=grid,
            in_specs=[
                pl.BlockSpec((tm, Cin), lambda m: (m, 0)),    # x tile
                pl.BlockSpec((tm, C8), lambda m: (m, 0)),     # prev tile
                pl.BlockSpec((Cin, Cout), lambda m: (0, 0)),  # W1 (resident)
                pl.BlockSpec((1, Cout), lambda m: (0, 0)),    # b1
                pl.BlockSpec((Cout, C8), lambda m: (0, 0)),   # W23 (all 8 offsets, resident)
                pl.BlockSpec((Cout, Cout), lambda m: (0, 0)), # W3a (resident)
                pl.BlockSpec((1, C8), lambda m: (0, 0)),      # folded bias
            ],
            out_specs=pl.BlockSpec((tm, C8), lambda m: (m, 0)),
        ),
        compiler_params=pltpu.CompilerParams(
            dimension_semantics=("parallel",),
            vmem_limit_bytes=64 * 1024 * 1024),
    )(x_flat, prev_all, w1, b1, w23, w3a, b_all)


def deup_cat_forward(x, prev, params, *, tm=512, use_bf16=False):
    """x: (N, Cin, D, H, W); prev: (N, Cout, 2D, 2H, 2W)  (NCDHW, as in PyTorch)."""
    conv1_w, conv1_b, conv2_w, conv2_b, conv3_w, conv3_b = params
    N, Cin, D, H, W = x.shape
    Cout = conv1_w.shape[0]
    M = N * D * H * W

    tm = min(tm, _round_up(M, 8))
    Mp = _round_up(M, tm)

    # --- glue: channels-last flattened pixel matrices (reshape/transpose only) ---
    x_flat = jnp.transpose(x, (0, 2, 3, 4, 1)).reshape(M, Cin)
    prev_all = jnp.reshape(
        jnp.transpose(
            jnp.reshape(jnp.transpose(prev, (0, 2, 3, 4, 1)),   # (N,2D,2H,2W,C)
                        (N, D, 2, H, 2, W, 2, Cout)),
            (0, 1, 3, 5, 2, 4, 6, 7)),                          # (N,D,H,W,kd,kh,kw,C)
        (M, 8 * Cout))                                          # column = o*Cout + c
    if Mp != M:
        x_flat = jnp.pad(x_flat, ((0, Mp - M), (0, 0)))
        prev_all = jnp.pad(prev_all, ((0, Mp - M), (0, 0)))

    # --- glue: weights (fold conv2 into conv3's up-half) ---
    w1 = conv1_w.reshape(Cout, Cin).T                           # (Cin, Cout)
    b1 = conv1_b.reshape(1, Cout)
    w3 = conv3_w.reshape(Cout, 2 * Cout)                        # cat order: [prev | up]
    w3a = w3[:, :Cout].T                                        # (Cout, Cout)
    w3b = w3[:, Cout:].T                                        # (Cout, Cout)
    # ConvTranspose3d weight (Cin=Cout, Cout, 2,2,2) -> per-offset (8, Cout, Cout)
    w2_o = jnp.transpose(conv2_w.reshape(Cout, Cout, 8), (2, 0, 1))
    # W23[c, o*Cout + k] = sum_j W2[o][c, j] * W3b[j, k]
    w23 = jnp.einsum('oij,jk->iok', w2_o, w3b).reshape(Cout, 8 * Cout)
    b_all = jnp.tile(conv2_b @ w3b + conv3_b, 8).reshape(1, 8 * Cout)

    if use_bf16:  # v6e/v7x: bf16 MXU path, fp32 accumulation and biases
        x_flat = x_flat.astype(jnp.bfloat16)
        prev_all = prev_all.astype(jnp.bfloat16)
        w1 = w1.astype(jnp.bfloat16)
        w23 = w23.astype(jnp.bfloat16)
        w3a = w3a.astype(jnp.bfloat16)

    out_all = deup_cat_pallas(x_flat, prev_all, w1, b1, w23, w3a, b_all, tm=tm)

    # --- glue: scatter the 8 offsets back to the upsampled volume (reshape/transpose) ---
    out = jnp.reshape(
        jnp.transpose(
            jnp.reshape(out_all[:M], (N, D, H, W, 2, 2, 2, Cout)),
            (0, 1, 4, 2, 5, 3, 6, 7)),                          # (N,D,kd,H,kh,W,kw,C)
        (N, 2 * D, 2 * H, 2 * W, Cout))
    return jnp.transpose(out, (0, 4, 1, 2, 3))                  # NCDHW


def deup_cat_reference(x, prev, params):
    """Plain-JAX reference matching PyTorch exactly (for validation)."""
    conv1_w, conv1_b, conv2_w, conv2_b, conv3_w, conv3_b = params
    N, Cin, D, H, W = x.shape
    Cout = conv1_w.shape[0]
    x1 = (jnp.einsum('ncdhw,oc->nodhw', x, conv1_w.reshape(Cout, Cin))
          + conv1_b[None, :, None, None, None])
    y = jnp.einsum('ncdhw,coxyz->nodxhywz', x1, conv2_w).reshape(
        N, Cout, 2 * D, 2 * H, 2 * W) + conv2_b[None, :, None, None, None]
    cat = jnp.concatenate([prev, y], axis=1)
    out = (jnp.einsum('ncdhw,oc->nodhw', cat, conv3_w.reshape(Cout, 2 * Cout))
           + conv3_b[None, :, None, None, None])
    return out


if __name__ == "__main__":
    N, Cin, Cout, D, H, W = 2, 16, 8, 4, 4, 4

    key = jax.random.PRNGKey(0)
    keys = jax.random.split(key, 8)
    conv1_w = 0.1 * jax.random.normal(keys[0], (Cout, Cin, 1, 1, 1), jnp.float32)
    conv1_b = 0.1 * jax.random.normal(keys[1], (Cout,), jnp.float32)
    conv2_w = 0.1 * jax.random.normal(keys[2], (Cout, Cout, 2, 2, 2), jnp.float32)
    conv2_b = 0.1 * jax.random.normal(keys[3], (Cout,), jnp.float32)
    conv3_w = 0.1 * jax.random.normal(keys[4], (Cout, 2 * Cout, 1, 1, 1), jnp.float32)
    conv3_b = 0.1 * jax.random.normal(keys[5], (Cout,), jnp.float32)
    params = (conv1_w, conv1_b, conv2_w, conv2_b, conv3_w, conv3_b)

    x = jax.random.normal(keys[6], (N, Cin, D, H, W), jnp.float32)
    prev = jax.random.normal(keys[7], (N, Cout, 2 * D, 2 * H, 2 * W), jnp.float32)

    fwd = jax.jit(functools.partial(deup_cat_forward, params=params))
    out = jax.block_until_ready(fwd(x, prev))

    ref = deup_cat_reference(x, prev, params)
    assert out.shape == (N, Cout, 2 * D, 2 * H, 2 * W)
    assert jnp.allclose(out, ref, atol=1e-4, rtol=1e-4), "mismatch vs reference"

    print("KERNEL_OK")
</pallas_src>

<mosaic_0001>
module attributes {stable_mosaic.version = 11 : i64} {
  func.func @deup_cat_kernel(%arg0: i32, %arg1: memref<128x16xf32, #tpu.memory_space<vmem>>, %arg2: memref<128x64xf32, #tpu.memory_space<vmem>>, %arg3: memref<16x8xf32, #tpu.memory_space<vmem>>, %arg4: memref<1x8xf32, #tpu.memory_space<vmem>>, %arg5: memref<8x64xf32, #tpu.memory_space<vmem>>, %arg6: memref<8x8xf32, #tpu.memory_space<vmem>>, %arg7: memref<1x64xf32, #tpu.memory_space<vmem>>, %arg8: memref<128x64xf32, #tpu.memory_space<vmem>>) attributes {dimension_semantics = [#tpu.dimension_semantics<parallel>], iteration_bounds = array<i64: 1>, scalar_prefetch = 0 : i64, scratch_operands = 0 : i64, tpu.core_type = #tpu.core_type<tc>, window_params = [{transform_indices = @transform_0, window_bounds = array<i64: 128, 16>}, {transform_indices = @transform_1, window_bounds = array<i64: 128, 64>}, {pipeline_mode = #tpu.pipeline_mode<synchronous>, transform_indices = @transform_2, window_bounds = array<i64: 16, 8>}, {pipeline_mode = #tpu.pipeline_mode<synchronous>, transform_indices = @transform_3, window_bounds = array<i64: 1, 8>}, {pipeline_mode = #tpu.pipeline_mode<synchronous>, transform_indices = @transform_4, window_bounds = array<i64: 8, 64>}, {pipeline_mode = #tpu.pipeline_mode<synchronous>, transform_indices = @transform_5, window_bounds = array<i64: 8, 8>}, {pipeline_mode = #tpu.pipeline_mode<synchronous>, transform_indices = @transform_6, window_bounds = array<i64: 1, 64>}, {transform_indices = @transform_7, window_bounds = array<i64: 128, 64>}]} {
    %c0 = arith.constant 0 : index
    %c0_0 = arith.constant 0 : index
    %0 = vector.load %arg1[%c0, %c0_0] : memref<128x16xf32, #tpu.memory_space<vmem>>, vector<128x16xf32>
    %c0_1 = arith.constant 0 : index
    %c0_2 = arith.constant 0 : index
    %1 = vector.load %arg3[%c0_1, %c0_2] : memref<16x8xf32, #tpu.memory_space<vmem>>, vector<16x8xf32>
    %cst = arith.constant dense<0.000000e+00> : vector<128x8xf32>
    %2 = tpu.matmul %0, %1, %cst {dimension_numbers = #tpu.dot_dimension_numbers<[1], [0], [0], [1], [0, 0, 1, 1], [], []>} : vector<128x16xf32>, vector<16x8xf32>, vector<128x8xf32> -> vector<128x8xf32>
    %c0_3 = arith.constant 0 : index
    %c0_4 = arith.constant 0 : index
    %3 = vector.load %arg4[%c0_3, %c0_4] : memref<1x8xf32, #tpu.memory_space<vmem>>, vector<1x8xf32>
    %4 = vector.broadcast %3 : vector<1x8xf32> to vector<128x8xf32>
    %5 = arith.addf %2, %4 : vector<128x8xf32>
    %c0_5 = arith.constant 0 : index
    %c0_6 = arith.constant 0 : index
    %6 = vector.load %arg5[%c0_5, %c0_6] : memref<8x64xf32, #tpu.memory_space<vmem>>, vector<8x64xf32>
    %cst_7 = arith.constant dense<0.000000e+00> : vector<128x64xf32>
    %7 = tpu.matmul %5, %6, %cst_7 {dimension_numbers = #tpu.dot_dimension_numbers<[1], [0], [0], [1], [0, 0, 1, 1], [], []>} : vector<128x8xf32>, vector<8x64xf32>, vector<128x64xf32> -> vector<128x64xf32>
    %c0_8 = arith.constant 0 : index
    %c0_9 = arith.constant 0 : index
    %8 = vector.load %arg7[%c0_8, %c0_9] : memref<1x64xf32, #tpu.memory_space<vmem>>, vector<1x64xf32>
    %9 = vector.broadcast %8 : vector<1x64xf32> to vector<128x64xf32>
    %10 = arith.addf %7, %9 : vector<128x64xf32>
    %c0_10 = arith.constant 0 : index
    %c0_11 = arith.constant 0 : index
    %11 = vector.load %arg2[%c0_10, %c0_11] : memref<128x64xf32, #tpu.memory_space<vmem>>, vector<128x64xf32>
    %c0_12 = arith.constant 0 : index
    %c0_13 = arith.constant 0 : index
    %12 = vector.load %arg6[%c0_12, %c0_13] : memref<8x8xf32, #tpu.memory_space<vmem>>, vector<8x8xf32>
    %13 = vector.extract_strided_slice %11 {offsets = [0, 0], sizes = [128, 8], strides = [1, 1]} : vector<128x64xf32> to vector<128x8xf32>
    %cst_14 = arith.constant dense<0.000000e+00> : vector<128x8xf32>
    %14 = tpu.matmul %13, %12, %cst_14 {dimension_numbers = #tpu.dot_dimension_numbers<[1], [0], [0], [1], [0, 0, 1, 1], [], []>} : vector<128x8xf32>, vector<8x8xf32>, vector<128x8xf32> -> vector<128x8xf32>
    %15 = vector.extract_strided_slice %11 {offsets = [0, 8], sizes = [128, 8], strides = [1, 1]} : vector<128x64xf32> to vector<128x8xf32>
    %cst_15 = arith.constant dense<0.000000e+00> : vector<128x8xf32>
    %16 = tpu.matmul %15, %12, %cst_15 {dimension_numbers = #tpu.dot_dimension_numbers<[1], [0], [0], [1], [0, 0, 1, 1], [], []>} : vector<128x8xf32>, vector<8x8xf32>, vector<128x8xf32> -> vector<128x8xf32>
    %17 = vector.extract_strided_slice %11 {offsets = [0, 16], sizes = [128, 8], strides = [1, 1]} : vector<128x64xf32> to vector<128x8xf32>
    %cst_16 = arith.constant dense<0.000000e+00> : vector<128x8xf32>
    %18 = tpu.matmul %17, %12, %cst_16 {dimension_numbers = #tpu.dot_dimension_numbers<[1], [0], [0], [1], [0, 0, 1, 1], [], []>} : vector<128x8xf32>, vector<8x8xf32>, vector<128x8xf32> -> vector<128x8xf32>
    %19 = vector.extract_strided_slice %11 {offsets = [0, 24], sizes = [128, 8], strides = [1, 1]} : vector<128x64xf32> to vector<128x8xf32>
    %cst_17 = arith.constant dense<0.000000e+00> : vector<128x8xf32>
    %20 = tpu.matmul %19, %12, %cst_17 {dimension_numbers = #tpu.dot_dimension_numbers<[1], [0], [0], [1], [0, 0, 1, 1], [], []>} : vector<128x8xf32>, vector<8x8xf32>, vector<128x8xf32> -> vector<128x8xf32>
    %21 = vector.extract_strided_slice %11 {offsets = [0, 32], sizes = [128, 8], strides = [1, 1]} : vector<128x64xf32> to vector<128x8xf32>
    %cst_18 = arith.constant dense<0.000000e+00> : vector<128x8xf32>
    %22 = tpu.matmul %21, %12, %cst_18 {dimension_numbers = #tpu.dot_dimension_numbers<[1], [0], [0], [1], [0, 0, 1, 1], [], []>} : vector<128x8xf32>, vector<8x8xf32>, vector<128x8xf32> -> vector<128x8xf32>
    %23 = vector.extract_strided_slice %11 {offsets = [0, 40], sizes = [128, 8], strides = [1, 1]} : vector<128x64xf32> to vector<128x8xf32>
    %cst_19 = arith.constant dense<0.000000e+00> : vector<128x8xf32>
    %24 = tpu.matmul %23, %12, %cst_19 {dimension_numbers = #tpu.dot_dimension_numbers<[1], [0], [0], [1], [0, 0, 1, 1], [], []>} : vector<128x8xf32>, vector<8x8xf32>, vector<128x8xf32> -> vector<128x8xf32>
    %25 = vector.extract_strided_slice %11 {offsets = [0, 48], sizes = [128, 8], strides = [1, 1]} : vector<128x64xf32> to vector<128x8xf32>
    %cst_20 = arith.constant dense<0.000000e+00> : vector<128x8xf32>
    %26 = tpu.matmul %25, %12, %cst_20 {dimension_numbers = #tpu.dot_dimension_numbers<[1], [0], [0], [1], [0, 0, 1, 1], [], []>} : vector<128x8xf32>, vector<8x8xf32>, vector<128x8xf32> -> vector<128x8xf32>
    %27 = vector.extract_strided_slice %11 {offsets = [0, 56], sizes = [128, 8], strides = [1, 1]} : vector<128x64xf32> to vector<128x8xf32>
    %cst_21 = arith.constant dense<0.000000e+00> : vector<128x8xf32>
    %28 = tpu.matmul %27, %12, %cst_21 {dimension_numbers = #tpu.dot_dimension_numbers<[1], [0], [0], [1], [0, 0, 1, 1], [], []>} : vector<128x8xf32>, vector<8x8xf32>, vector<128x8xf32> -> vector<128x8xf32>
    %29 = tpu.concatenate %14, %16, %18, %20, %22, %24, %26, %28 in 1 : vector<128x8xf32>, vector<128x8xf32>, vector<128x8xf32>, vector<128x8xf32>, vector<128x8xf32>, vector<128x8xf32>, vector<128x8xf32>, vector<128x8xf32> -> vector<128x64xf32>
    %30 = arith.addf %10, %29 : vector<128x64xf32>
    %c0_22 = arith.constant 0 : index
    %c0_23 = arith.constant 0 : index
    %31 = vector.load %arg8[%c0_22, %c0_23] : memref<128x64xf32, #tpu.memory_space<vmem>>, vector<128x64xf32>
    tpu.vector_store %arg8[%c0_22, %c0_23], %30 {strides = array<i32>} : memref<128x64xf32, #tpu.memory_space<vmem>>, vector<128x64xf32>,
    return
  }
  func.func @transform_0(%arg0: i32) -> (i32, i32) {
    %c0_i32 = arith.constant 0 : i32
    %c0_i32_0 = arith.constant 0 : i32
    return %arg0, %c0_i32 : i32, i32
  }
  func.func @transform_1(%arg0: i32) -> (i32, i32) {
    %c0_i32 = arith.constant 0 : i32
    %c0_i32_0 = arith.constant 0 : i32
    return %arg0, %c0_i32 : i32, i32
  }
  func.func @transform_2(%arg0: i32) -> (i32, i32) {
    %c0_i32 = arith.constant 0 : i32
    %c0_i32_0 = arith.constant 0 : i32
    %c0_i32_1 = arith.constant 0 : i32
    return %c0_i32, %c0_i32_0 : i32, i32
  }
  func.func @transform_3(%arg0: i32) -> (i32, i32) {
    %c0_i32 = arith.constant 0 : i32
    %c0_i32_0 = arith.constant 0 : i32
    %c0_i32_1 = arith.constant 0 : i32
    return %c0_i32, %c0_i32_0 : i32, i32
  }
  func.func @transform_4(%arg0: i32) -> (i32, i32) {
    %c0_i32 = arith.constant 0 : i32
    %c0_i32_0 = arith.constant 0 : i32
    %c0_i32_1 = arith.constant 0 : i32
    return %c0_i32, %c0_i32_0 : i32, i32
  }
  func.func @transform_5(%arg0: i32) -> (i32, i32) {
    %c0_i32 = arith.constant 0 : i32
    %c0_i32_0 = arith.constant 0 : i32
    %c0_i32_1 = arith.constant 0 : i32
    return %c0_i32, %c0_i32_0 : i32, i32
  }
  func.func @transform_6(%arg0: i32) -> (i32, i32) {
    %c0_i32 = arith.constant 0 : i32
    %c0_i32_0 = arith.constant 0 : i32
    %c0_i32_1 = arith.constant 0 : i32
    return %c0_i32, %c0_i32_0 : i32, i32
  }
  func.func @transform_7(%arg0: i32) -> (i32, i32) {
    %c0_i32 = arith.constant 0 : i32
    %c0_i32_0 = arith.constant 0 : i32
    return %arg0, %c0_i32 : i32, i32
  }
}

</mosaic_0001>

<llo_original>
// kernel: tile.8
$region0: #{tile.8}
  #allocation0 [shape = 's32[1]{0}', space=sflag, size = 0x4, scoped, tag = 'scoped memory for tile.8']
  %s0 = inlined_call_operand.vmem [shape: f32[8], index: 0, kind: input, shape index: {}]
  %s1 = inlined_call_operand.vmem [shape: f32[8,8], index: 1, kind: output, shape index: {}]
  // Predicated region
  $region2: #{tile.8} parent=0 // pred_check
    _
  $region3: #{tile.8} parent=0 // pred_check_branch
    %3 = sbr.rel (0) target = $region5
  $region4: #{tile.8} parent=0 // pred_region
    _
  $region5: #{tile.8} parent=0 // pred_fallthru
    _
  %v4 = vld [vmem:[%s0] ss:$0 sm:$0xff]
  %5 = vst [vmem:[%s1] sm:$0xff] %v4

// kernel: tile.9
$region0: #{tile.9}
  %s0 = inlined_call_operand.vmem [shape: f32[8,8], index: 0, kind: input, shape index: {}]
  %s1 = inlined_call_operand.vmem [shape: f32[1,64], index: 1, kind: output, shape index: {}]
  $region1: #{tile.9} parent=0
    #allocation0 [shape = 'u8[4096]{0}', space=vmem, size = 0x1000, scoped, tag = 'scoped mem for output reshape']
    %v2 = vld [vmem:[%s0] sm:$0x1]
    %vm3 = vcmask 64512
    %4 = vst.msk [vmem:[#allocation0] sm:$0x1] %vm3, %v2
    %s5 = scalar_lea.vmem %s0, 7
    %v6 = vld [vmem:[%s5] sm:$0x1]
    %7 = vrot.lane.b32.xlu0 %v6, 56
    %v8 = vpop.permute.xlu0 %7
    %vm9 = vcmask 523712
    %10 = vst.msk [vmem:[#allocation0] sm:$0x1] %vm9, %v8
    %s11 = scalar_lea.vmem %s0, 6
    %v12 = vld [vmem:[%s11] sm:$0x1]
    %13 = vrot.lane.b32.xlu0 %v12, 48
    %v14 = vpop.permute.xlu0 %13
    %vm15 = vcmask 458112
    %16 = vst.msk [vmem:[#allocation0] sm:$0x1] %vm15, %v14
    %s17 = scalar_lea.vmem %s0, 5
    %v18 = vld [vmem:[%s17] sm:$0x1]
    %19 = vrot.lane.b32.xlu0 %v18, 40
    %v20 = vpop.permute.xlu0 %19
    %vm21 = vcmask 392512
    %22 = vst.msk [vmem:[#allocation0] sm:$0x1] %vm21, %v20
    %s23 = scalar_lea.vmem %s0, 4
    %v24 = vld [vmem:[%s23] sm:$0x1]
    %25 = vrot.lane.b32.xlu0 %v24, 32
    %v26 = vpop.permute.xlu0 %25
    %vm27 = vcmask 326912
    %28 = vst.msk [vmem:[#allocation0] sm:$0x1] %vm27, %v26
    %s29 = scalar_lea.vmem %s0, 3
    %v30 = vld [vmem:[%s29] sm:$0x1]
    %31 = vrot.lane.b32.xlu0 %v30, 24
    %v32 = vpop.permute.xlu0 %31
    %vm33 = vcmask 261312
    %34 = vst.msk [vmem:[#allocation0] sm:$0x1] %vm33, %v32
    %s35 = scalar_lea.vmem %s0, 2
    %v36 = vld [vmem:[%s35] sm:$0x1]
    %37 = vrot.lane.b32.xlu0 %v36, 16
    %v38 = vpop.permute.xlu0 %37
    %vm39 = vcmask 195712
    %40 = vst.msk [vmem:[#allocation0] sm:$0x1] %vm39, %v38
    %s41 = scalar_lea.vmem %s0, 1
    %v42 = vld [vmem:[%s41] sm:$0x1]
    %43 = vrot.lane.b32.xlu0 %v42, 8
    %v44 = vpop.permute.xlu0 %43
    %vm45 = vcmask 130112
    %46 = vst.msk [vmem:[#allocation0] sm:$0x1] %vm45, %v44
    %s48 = ssub.s32 2, 1
    %v49 = vld [vmem:[#allocation0] sm:%s48]
    %s51 = ssub.s32 2, 1
    %52 = vst [vmem:[%s1] sm:%s51] %v49

// kernel: deup_cat_forward.1
$region0: #{deup_cat_forward.1}
  #allocation0 [shape = 'u32[]', space=smem, size = 0x4, offset = 0x4, fixed_abs, tag = 'smem constant byte address 0x4 - core index']
  #allocation1 [shape = 'u32[72,128]{1,0:T(1,128)}', space=vmem, size = 0x9000, scoped, tag = 'internal scratch']
  %s0 = inlined_call_operand.vmem [shape: f32[128,16], index: 0, kind: input, shape index: {}]
  %s1 = inlined_call_operand.vmem [shape: f32[128,64], index: 1, kind: input, shape index: {}]
  %s2 = inlined_call_operand.vmem [shape: f32[16,8], index: 2, kind: input, shape index: {}]
  %s3 = inlined_call_operand.vmem [shape: f32[1,8], index: 3, kind: input, shape index: {}]
  %s4 = inlined_call_operand.vmem [shape: f32[8,64], index: 4, kind: input, shape index: {}]
  %s5 = inlined_call_operand.vmem [shape: f32[8,8], index: 5, kind: input, shape index: {}]
  %s6 = inlined_call_operand.vmem [shape: f32[1,64], index: 6, kind: input, shape index: {}]
  %s7 = inlined_call_operand.vmem [shape: f32[128,64], index: 7, kind: output, shape index: {}]
  %s8 = sld [smem:[#allocation0]]
  $region38: #{deup_cat_forward.1} parent=0
    _
  %s10 = ssub.s32 1, %s8
  %s11 = scalar_select 0, %s10, %s8
  // Predicated region
  $region2: #{deup_cat_forward.1} parent=0 // pred_check
    _
  $region3: #{deup_cat_forward.1} parent=0 // pred_check_branch
    %13 = sbr.rel (0) target = $region5
  $region4: #{deup_cat_forward.1} parent=0 // pred_region
    _
  $region5: #{deup_cat_forward.1} parent=0 // pred_fallthru
    _
  // Predicated region
  $region6: #{deup_cat_forward.1} parent=0 // pred_check
    _
  $region7: #{deup_cat_forward.1} parent=0 // pred_check_branch
    %15 = sbr.rel (0) target = $region9
  $region8: #{deup_cat_forward.1} parent=0 // pred_region
    _
  $region9: #{deup_cat_forward.1} parent=0 // pred_fallthru
    _
  // Predicated region
  $region10: #{deup_cat_forward.1} parent=0 // pred_check
    _
  $region11: #{deup_cat_forward.1} parent=0 // pred_check_branch
    %17 = sbr.rel (0) target = $region13
  $region12: #{deup_cat_forward.1} parent=0 // pred_region
    _
  $region13: #{deup_cat_forward.1} parent=0 // pred_fallthru
    _
  // Predicated region
  $region14: #{deup_cat_forward.1} parent=0 // pred_check
    _
  $region15: #{deup_cat_forward.1} parent=0 // pred_check_branch
    %19 = sbr.rel (0) target = $region17
  $region16: #{deup_cat_forward.1} parent=0 // pred_region
    _
  $region17: #{deup_cat_forward.1} parent=0 // pred_fallthru
    _
  // Predicated region
  $region18: #{deup_cat_forward.1} parent=0 // pred_check
    _
  $region19: #{deup_cat_forward.1} parent=0 // pred_check_branch
    %21 = sbr.rel (0) target = $region21
  $region20: #{deup_cat_forward.1} parent=0 // pred_region
    _
  $region21: #{deup_cat_forward.1} parent=0 // pred_fallthru
    _
  // Predicated region
  $region22: #{deup_cat_forward.1} parent=0 // pred_check
    _
  $region23: #{deup_cat_forward.1} parent=0 // pred_check_branch
    %23 = sbr.rel (0) target = $region25
  $region24: #{deup_cat_forward.1} parent=0 // pred_region
    _
  $region25: #{deup_cat_forward.1} parent=0 // pred_fallthru
    _
  // Predicated region
  $region26: #{deup_cat_forward.1} parent=0 // pred_check
    _
  $region27: #{deup_cat_forward.1} parent=0 // pred_check_branch
    %25 = sbr.rel (0) target = $region29
  $region28: #{deup_cat_forward.1} parent=0 // pred_region
    _
  $region29: #{deup_cat_forward.1} parent=0 // pred_fallthru
    _
  %v26 = vld [vmem:[%s0] sm:$0xff]
  %v27 = vld [vmem:[%s0 + $0x8] sm:$0xff]
  %v28 = vld [vmem:[%s0 + $0x10] sm:$0xff]
  %v29 = vld [vmem:[%s0 + $0x18] sm:$0xff]
  %v30 = vld [vmem:[%s0 + $0x20] sm:$0xff]
  %v31 = vld [vmem:[%s0 + $0x28] sm:$0xff]
  %v32 = vld [vmem:[%s0 + $0x30] sm:$0xff]
  %v33 = vld [vmem:[%s0 + $0x38] sm:$0xff]
  %v34 = vld [vmem:[%s0 + $0x40] sm:$0xff]
  %v35 = vld [vmem:[%s0 + $0x48] sm:$0xff]
  %v36 = vld [vmem:[%s0 + $0x50] sm:$0xff]
  %v37 = vld [vmem:[%s0 + $0x58] sm:$0xff]
  %v38 = vld [vmem:[%s0 + $0x60] sm:$0xff]
  %v39 = vld [vmem:[%s0 + $0x68] sm:$0xff]
  %v40 = vld [vmem:[%s0 + $0x70] sm:$0xff]
  %v41 = vld [vmem:[%s0 + $0x78] sm:$0xff]
  %v42 = vld [vmem:[%s2] sm:$0xff]
  %v43 = vld [vmem:[%s2 + $0x8] sm:$0xff]
  %v44 = vld [vmem:[%s3] sm:$0x1]
  %v46 = vperm.slane %v44, 0
  %vm48 = vcmask 130048
  %v50 = vsel %vm48, %v26, 0
  %v53 = vsel %vm48, %v27, 0
  %v56 = vsel %vm48, %v28, 0
  %v59 = vsel %vm48, %v29, 0
  %v62 = vsel %vm48, %v30, 0
  %v65 = vsel %vm48, %v31, 0
  %v68 = vsel %vm48, %v32, 0
  %v71 = vsel %vm48, %v33, 0
  %v74 = vsel %vm48, %v34, 0
  %v77 = vsel %vm48, %v35, 0
  %v80 = vsel %vm48, %v36, 0
  %v83 = vsel %vm48, %v37, 0
  %v86 = vsel %vm48, %v38, 0
  %v89 = vsel %vm48, %v39, 0
  %v92 = vsel %vm48, %v40, 0
  %v95 = vsel %vm48, %v41, 0
  %97 = vmatpush.msra.mxu0 0.0
  %98 = vmatpush.msra.mxu0 0.0
  %99 = vmatpush.msra.mxu0 0.0
  %100 = vmatpush.msra.mxu0 0.0
  %101 = vmatpush.msra.mxu0 0.0
  %102 = vmatpush.msra.mxu0 0.0
  %103 = vmatpush.msra.mxu0 0.0
  %104 = vmatpush.msra.mxu0 0.0
  %105 = vmatpush.msra.mxu0 0.0
  %106 = vmatpush.msra.mxu0 0.0
  %107 = vmatpush.msra.mxu0 0.0
  %108 = vmatpush.msra.mxu0 0.0
  %109 = vmatpush.msra.mxu0 0.0
  %110 = vmatpush.msra.mxu0 0.0
  %111 = vmatpush.msra.mxu0 %v43
  %112 = vmatpush.msra.mxu0 %v42
  %113 = vmatmul.f32.gmra.mxu0 %v50
  %v114 = vpop.f32.mrf.mxu0
  %v115 = vadd.f32 %v46, %v114
  %116 = vmatmul.f32.gmra.mxu0 %v53
  %v117 = vpop.f32.mrf.mxu0
  %v118 = vadd.f32 %v46, %v117
  %119 = vmatmul.f32.gmra.mxu0 %v56
  %v120 = vpop.f32.mrf.mxu0
  %v121 = vadd.f32 %v46, %v120
  %122 = vmatmul.f32.gmra.mxu0 %v59
  %v123 = vpop.f32.mrf.mxu0
  %v124 = vadd.f32 %v46, %v123
  %125 = vmatmul.f32.gmra.mxu0 %v62
  %v126 = vpop.f32.mrf.mxu0
  %v127 = vadd.f32 %v46, %v126
  %128 = vmatmul.f32.gmra.mxu0 %v65
  %v129 = vpop.f32.mrf.mxu0
  %v130 = vadd.f32 %v46, %v129
  %131 = vmatmul.f32.gmra.mxu0 %v68
  %v132 = vpop.f32.mrf.mxu0
  %v133 = vadd.f32 %v46, %v132
  %134 = vmatmul.f32.gmra.mxu0 %v71
  %v135 = vpop.f32.mrf.mxu0
  %v136 = vadd.f32 %v46, %v135
  %137 = vmatmul.f32.gmra.mxu0 %v74
  %v138 = vpop.f32.mrf.mxu0
  %v139 = vadd.f32 %v46, %v138
  %140 = vmatmul.f32.gmra.mxu0 %v77
  %v141 = vpop.f32.mrf.mxu0
  %v142 = vadd.f32 %v46, %v141
  %143 = vmatmul.f32.gmra.mxu0 %v80
  %v144 = vpop.f32.mrf.mxu0
  %v145 = vadd.f32 %v46, %v144
  %146 = vmatmul.f32.gmra.mxu0 %v83
  %v147 = vpop.f32.mrf.mxu0
  %v148 = vadd.f32 %v46, %v147
  %149 = vmatmul.f32.gmra.mxu0 %v86
  %v150 = vpop.f32.mrf.mxu0
  %v151 = vadd.f32 %v46, %v150
  %152 = vmatmul.f32.gmra.mxu0 %v89
  %v153 = vpop.f32.mrf.mxu0
  %v154 = vadd.f32 %v46, %v153
  %155 = vmatmul.f32.gmra.mxu0 %v92
  %v156 = vpop.f32.mrf.mxu0
  %v157 = vadd.f32 %v46, %v156
  %158 = vmatmul.f32.gmra.mxu0 %v95
  %v159 = vpop.f32.mrf.mxu0
  %v160 = vadd.f32 %v46, %v159
  %161 = vdwg.mxu0
  %v162 = vld [vmem:[%s4] sm:$0xff]
  %v163 = vld [vmem:[%s6] sm:$0x1]
  %v165 = vperm.slane %v163, 0
  %vm167 = vcmask 64512
  %v169 = vsel %vm167, %v115, 0
  %v172 = vsel %vm167, %v118, 0
  %v175 = vsel %vm167, %v121, 0
  %v178 = vsel %vm167, %v124, 0
  %v181 = vsel %vm167, %v127, 0
  %v184 = vsel %vm167, %v130, 0
  %v187 = vsel %vm167, %v133, 0
  %v190 = vsel %vm167, %v136, 0
  %v193 = vsel %vm167, %v139, 0
  %v196 = vsel %vm167, %v142, 0
  %v199 = vsel %vm167, %v145, 0
  %v202 = vsel %vm167, %v148, 0
  %v205 = vsel %vm167, %v151, 0
  %v208 = vsel %vm167, %v154, 0
  %v211 = vsel %vm167, %v157, 0
  %v214 = vsel %vm167, %v160, 0
  %216 = vmatpush.msra.mxu0 0.0
  %217 = vmatpush.msra.mxu0 0.0
  %218 = vmatpush.msra.mxu0 0.0
  %219 = vmatpush.msra.mxu0 0.0
  %220 = vmatpush.msra.mxu0 0.0
  %221 = vmatpush.msra.mxu0 0.0
  %222 = vmatpush.msra.mxu0 0.0
  %223 = vmatpush.msra.mxu0 0.0
  %224 = vmatpush.msra.mxu0 0.0
  %225 = vmatpush.msra.mxu0 0.0
  %226 = vmatpush.msra.mxu0 0.0
  %227 = vmatpush.msra.mxu0 0.0
  %228 = vmatpush.msra.mxu0 0.0
  %229 = vmatpush.msra.mxu0 0.0
  %230 = vmatpush.msra.mxu0 0.0
  %231 = vmatpush.msra.mxu0 %v162
  %232 = vmatmul.f32.gmra.mxu0 %v169
  %v233 = vpop.f32.mrf.mxu0
  %v234 = vadd.f32 %v165, %v233
  %235 = vmatmul.f32.gmra.mxu0 %v172
  %v236 = vpop.f32.mrf.mxu0
  %v237 = vadd.f32 %v165, %v236
  %238 = vmatmul.f32.gmra.mxu0 %v175
  %v239 = vpop.f32.mrf.mxu0
  %v240 = vadd.f32 %v165, %v239
  %241 = vmatmul.f32.gmra.mxu0 %v178
  %v242 = vpop.f32.mrf.mxu0
  %v243 = vadd.f32 %v165, %v242
  %244 = vmatmul.f32.gmra.mxu0 %v181
  %v245 = vpop.f32.mrf.mxu0
  %v246 = vadd.f32 %v165, %v245
  %247 = vmatmul.f32.gmra.mxu0 %v184
  %v248 = vpop.f32.mrf.mxu0
  %v249 = vadd.f32 %v165, %v248
  %250 = vmatmul.f32.gmra.mxu0 %v187
  %v251 = vpop.f32.mrf.mxu0
  %v252 = vadd.f32 %v165, %v251
  %253 = vmatmul.f32.gmra.mxu0 %v190
  %v254 = vpop.f32.mrf.mxu0
  %v255 = vadd.f32 %v165, %v254
  %256 = vmatmul.f32.gmra.mxu0 %v193
  %v257 = vpop.f32.mrf.mxu0
  %v258 = vadd.f32 %v165, %v257
  %259 = vmatmul.f32.gmra.mxu0 %v196
  %v260 = vpop.f32.mrf.mxu0
  %v261 = vadd.f32 %v165, %v260
  %262 = vmatmul.f32.gmra.mxu0 %v199
  %v263 = vpop.f32.mrf.mxu0
  %v264 = vadd.f32 %v165, %v263
  %265 = vmatmul.f32.gmra.mxu0 %v202
  %v266 = vpop.f32.mrf.mxu0
  %v267 = vadd.f32 %v165, %v266
  %268 = vmatmul.f32.gmra.mxu0 %v205
  %v269 = vpop.f32.mrf.mxu0
  %v270 = vadd.f32 %v165, %v269
  %271 = vmatmul.f32.gmra.mxu0 %v208
  %v272 = vpop.f32.mrf.mxu0
  %v273 = vadd.f32 %v165, %v272
  %274 = vmatmul.f32.gmra.mxu0 %v211
  %v275 = vpop.f32.mrf.mxu0
  %v276 = vadd.f32 %v165, %v275
  %277 = vmatmul.f32.gmra.mxu0 %v214
  %v278 = vpop.f32.mrf.mxu0
  %v279 = vadd.f32 %v165, %v278
  %280 = vdwg.mxu0
  %v281 = vld [vmem:[%s1] sm:$0xff]
  %v282 = vld [vmem:[%s1 + $0x8] sm:$0xff]
  %v283 = vld [vmem:[%s1 + $0x10] sm:$0xff]
  %v284 = vld [vmem:[%s1 + $0x18] sm:$0xff]
  %v285 = vld [vmem:[%s1 + $0x20] sm:$0xff]
  %v286 = vld [vmem:[%s1 + $0x28] sm:$0xff]
  %v287 = vld [vmem:[%s1 + $0x30] sm:$0xff]
  %v288 = vld [vmem:[%s1 + $0x38] sm:$0xff]
  %v289 = vld [vmem:[%s1 + $0x40] sm:$0xff]
  %v290 = vld [vmem:[%s1 + $0x48] sm:$0xff]
  %v291 = vld [vmem:[%s1 + $0x50] sm:$0xff]
  %v292 = vld [vmem:[%s1 + $0x58] sm:$0xff]
  %v293 = vld [vmem:[%s1 + $0x60] sm:$0xff]
  %v294 = vld [vmem:[%s1 + $0x68] sm:$0xff]
  %v295 = vld [vmem:[%s1 + $0x70] sm:$0xff]
  %v296 = vld [vmem:[%s1 + $0x78] sm:$0xff]
  %v297 = vld [vmem:[%s5] sm:$0xff]
  %v299 = vsel %vm167, %v281, 0
  %v302 = vsel %vm167, %v282, 0
  %v305 = vsel %vm167, %v283, 0
  %v308 = vsel %vm167, %v284, 0
  %v311 = vsel %vm167, %v285, 0
  %v314 = vsel %vm167, %v286, 0
  %v317 = vsel %vm167, %v287, 0
  %v320 = vsel %vm167, %v288, 0
  %v323 = vsel %vm167, %v289, 0
  %v326 = vsel %vm167, %v290, 0
  %v329 = vsel %vm167, %v291, 0
  %v332 = vsel %vm167, %v292, 0
  %v335 = vsel %vm167, %v293, 0
  %v338 = vsel %vm167, %v294, 0
  %v341 = vsel %vm167, %v295, 0
  %v344 = vsel %vm167, %v296, 0
  %346 = vmatpush.msra.mxu0 0.0
  %347 = vmatpush.msra.mxu0 0.0
  %348 = vmatpush.msra.mxu0 0.0
  %349 = vmatpush.msra.mxu0 0.0
  %350 = vmatpush.msra.mxu0 0.0
  %351 = vmatpush.msra.mxu0 0.0
  %352 = vmatpush.msra.mxu0 0.0
  %353 = vmatpush.msra.mxu0 0.0
  %354 = vmatpush.msra.mxu0 0.0
  %355 = vmatpush.msra.mxu0 0.0
  %356 = vmatpush.msra.mxu0 0.0
  %357 = vmatpush.msra.mxu0 0.0
  %358 = vmatpush.msra.mxu0 0.0
  %359 = vmatpush.msra.mxu0 0.0
  %360 = vmatpush.msra.mxu0 0.0
  %361 = vmatpush.msra.mxu0 %v297
  %362 = vmatmul.f32.gmra.mxu0 %v299
  %v363 = vpop.f32.mrf.mxu0
  %v364 = vadd.f32 0.0, %v363
  %365 = vmatmul.f32.gmra.mxu0 %v302
  %v366 = vpop.f32.mrf.mxu0
  %v367 = vadd.f32 0.0, %v366
  %368 = vmatmul.f32.gmra.mxu0 %v305
  %v369 = vpop.f32.mrf.mxu0
  %v370 = vadd.f32 0.0, %v369
  %371 = vmatmul.f32.gmra.mxu0 %v308
  %v372 = vpop.f32.mrf.mxu0
  %v373 = vadd.f32 0.0, %v372
  %374 = vmatmul.f32.gmra.mxu0 %v311
  %v375 = vpop.f32.mrf.mxu0
  %v376 = vadd.f32 0.0, %v375
  %377 = vmatmul.f32.gmra.mxu0 %v314
  %v378 = vpop.f32.mrf.mxu0
  %v379 = vadd.f32 0.0, %v378
  %380 = vmatmul.f32.gmra.mxu0 %v317
  %v381 = vpop.f32.mrf.mxu0
  %v382 = vadd.f32 0.0, %v381
  %383 = vmatmul.f32.gmra.mxu0 %v320
  %v384 = vpop.f32.mrf.mxu0
  %v385 = vadd.f32 0.0, %v384
  %386 = vmatmul.f32.gmra.mxu0 %v323
  %v387 = vpop.f32.mrf.mxu0
  %v388 = vadd.f32 0.0, %v387
  %389 = vmatmul.f32.gmra.mxu0 %v326
  %v390 = vpop.f32.mrf.mxu0
  %v391 = vadd.f32 0.0, %v390
  %392 = vmatmul.f32.gmra.mxu0 %v329
  %v393 = vpop.f32.mrf.mxu0
  %v394 = vadd.f32 0.0, %v393
  %395 = vmatmul.f32.gmra.mxu0 %v332
  %v396 = vpop.f32.mrf.mxu0
  %v397 = vadd.f32 0.0, %v396
  %398 = vmatmul.f32.gmra.mxu0 %v335
  %v399 = vpop.f32.mrf.mxu0
  %v400 = vadd.f32 0.0, %v399
  %401 = vmatmul.f32.gmra.mxu0 %v338
  %v402 = vpop.f32.mrf.mxu0
  %v403 = vadd.f32 0.0, %v402
  %404 = vmatmul.f32.gmra.mxu0 %v341
  %v405 = vpop.f32.mrf.mxu0
  %v406 = vadd.f32 0.0, %v405
  %407 = vmatmul.f32.gmra.mxu0 %v344
  %v408 = vpop.f32.mrf.mxu0
  %v409 = vadd.f32 0.0, %v408
  %410 = vdwg.mxu0
  %411 = vrot.lane.b32.xlu0 %v281, 120
  %v412 = vpop.permute.xlu0 %411
  %413 = vrot.lane.b32.xlu0 %v282, 120
  %v414 = vpop.permute.xlu0 %413
  %415 = vrot.lane.b32.xlu0 %v283, 120
  %v416 = vpop.permute.xlu0 %415
  %417 = vrot.lane.b32.xlu0 %v284, 120
  %v418 = vpop.permute.xlu0 %417
  %419 = vrot.lane.b32.xlu0 %v285, 120
  %v420 = vpop.permute.xlu0 %419
  %421 = vrot.lane.b32.xlu0 %v286, 120
  %v422 = vpop.permute.xlu0 %421
  %423 = vrot.lane.b32.xlu0 %v287, 120
  %v424 = vpop.permute.xlu0 %423
  %425 = vrot.lane.b32.xlu0 %v288, 120
  %v426 = vpop.permute.xlu0 %425
  %427 = vrot.lane.b32.xlu0 %v289, 120
  %v428 = vpop.permute.xlu0 %427
  %429 = vrot.lane.b32.xlu0 %v290, 120
  %v430 = vpop.permute.xlu0 %429
  %431 = vrot.lane.b32.xlu0 %v291, 120
  %v432 = vpop.permute.xlu0 %431
  %433 = vrot.lane.b32.xlu0 %v292, 120
  %v434 = vpop.permute.xlu0 %433
  %435 = vrot.lane.b32.xlu0 %v293, 120
  %v436 = vpop.permute.xlu0 %435
  %437 = vrot.lane.b32.xlu0 %v294, 120
  %v438 = vpop.permute.xlu0 %437
  %439 = vrot.lane.b32.xlu0 %v295, 120
  %v440 = vpop.permute.xlu0 %439
  %441 = vrot.lane.b32.xlu0 %v296, 120
  %v442 = vpop.permute.xlu0 %441
  %v443 = vsel %vm167, %v412, 0
  %v445 = vsel %vm167, %v414, 0
  %v447 = vsel %vm167, %v416, 0
  %v449 = vsel %vm167, %v418, 0
  %v451 = vsel %vm167, %v420, 0
  %v453 = vsel %vm167, %v422, 0
  %v455 = vsel %vm167, %v424, 0
  %v457 = vsel %vm167, %v426, 0
  %v459 = vsel %vm167, %v428, 0
  %v461 = vsel %vm167, %v430, 0
  %v463 = vsel %vm167, %v432, 0
  %v465 = vsel %vm167, %v434, 0
  %v467 = vsel %vm167, %v436, 0
  %v469 = vsel %vm167, %v438, 0
  %v471 = vsel %vm167, %v440, 0
  %v473 = vsel %vm167, %v442, 0
  %475 = vmatpush.msra.mxu0 0.0
  %476 = vmatpush.msra.mxu0 0.0
  %477 = vmatpush.msra.mxu0 0.0
  %478 = vmatpush.msra.mxu0 0.0
  %479 = vmatpush.msra.mxu0 0.0
  %480 = vmatpush.msra.mxu0 0.0
  %481 = vmatpush.msra.mxu0 0.0
  %482 = vmatpush.msra.mxu0 0.0
  %483 = vmatpush.msra.mxu0 0.0
  %484 = vmatpush.msra.mxu0 0.0
  %485 = vmatpush.msra.mxu0 0.0
  %486 = vmatpush.msra.mxu0 0.0
  %487 = vmatpush.msra.mxu0 0.0
  %488 = vmatpush.msra.mxu0 0.0
  %489 = vmatpush.msra.mxu0 0.0
  %490 = vmatpush.msra.mxu0 %v297
  %491 = vmatmul.f32.gmra.mxu0 %v443
  %v492 = vpop.f32.mrf.mxu0
  %v493 = vadd.f32 0.0, %v492
  %494 = vmatmul.f32.gmra.mxu0 %v445
  %v495 = vpop.f32.mrf.mxu0
  %v496 = vadd.f32 0.0, %v495
  %497 = vmatmul.f32.gmra.mxu0 %v447
  %v498 = vpop.f32.mrf.mxu0
  %v499 = vadd.f32 0.0, %v498
  %500 = vmatmul.f32.gmra.mxu0 %v449
  %v501 = vpop.f32.mrf.mxu0
  %v502 = vadd.f32 0.0, %v501
  %503 = vmatmul.f32.gmra.mxu0 %v451
  %v504 = vpop.f32.mrf.mxu0
  %v505 = vadd.f32 0.0, %v504
  %506 = vmatmul.f32.gmra.mxu0 %v453
  %v507 = vpop.f32.mrf.mxu0
  %v508 = vadd.f32 0.0, %v507
  %509 = vmatmul.f32.gmra.mxu0 %v455
  %v510 = vpop.f32.mrf.mxu0
  %v511 = vadd.f32 0.0, %v510
  %512 = vmatmul.f32.gmra.mxu0 %v457
  %v513 = vpop.f32.mrf.mxu0
  %v514 = vadd.f32 0.0, %v513
  %515 = vmatmul.f32.gmra.mxu0 %v459
  %v516 = vpop.f32.mrf.mxu0
  %v517 = vadd.f32 0.0, %v516
  %518 = vmatmul.f32.gmra.mxu0 %v461
  %v519 = vpop.f32.mrf.mxu0
  %v520 = vadd.f32 0.0, %v519
  %521 = vmatmul.f32.gmra.mxu0 %v463
  %v522 = vpop.f32.mrf.mxu0
  %v523 = vadd.f32 0.0, %v522
  %524 = vmatmul.f32.gmra.mxu0 %v465
  %v525 = vpop.f32.mrf.mxu0
  %v526 = vadd.f32 0.0, %v525
  %527 = vmatmul.f32.gmra.mxu0 %v467
  %v528 = vpop.f32.mrf.mxu0
  %v529 = vadd.f32 0.0, %v528
  %530 = vmatmul.f32.gmra.mxu0 %v469
  %v531 = vpop.f32.mrf.mxu0
  %v532 = vadd.f32 0.0, %v531
  %533 = vmatmul.f32.gmra.mxu0 %v471
  %v534 = vpop.f32.mrf.mxu0
  %v535 = vadd.f32 0.0, %v534
  %536 = vmatmul.f32.gmra.mxu0 %v473
  %v537 = vpop.f32.mrf.mxu0
  %v538 = vadd.f32 0.0, %v537
  %539 = vdwg.mxu0
  %540 = vrot.lane.b32.xlu0 %v281, 112
  %v541 = vpop.permute.xlu0 %540
  %542 = vrot.lane.b32.xlu0 %v282, 112
  %v543 = vpop.permute.xlu0 %542
  %544 = vrot.lane.b32.xlu0 %v283, 112
  %v545 = vpop.permute.xlu0 %544
  %546 = vrot.lane.b32.xlu0 %v284, 112
  %v547 = vpop.permute.xlu0 %546
  %548 = vrot.lane.b32.xlu0 %v285, 112
  %v549 = vpop.permute.xlu0 %548
  %550 = vrot.lane.b32.xlu0 %v286, 112
  %v551 = vpop.permute.xlu0 %550
  %552 = vrot.lane.b32.xlu0 %v287, 112
  %v553 = vpop.permute.xlu0 %552
  %554 = vrot.lane.b32.xlu0 %v288, 112
  %v555 = vpop.permute.xlu0 %554
  %556 = vrot.lane.b32.xlu0 %v289, 112
  %v557 = vpop.permute.xlu0 %556
  %558 = vrot.lane.b32.xlu0 %v290, 112
  %v559 = vpop.permute.xlu0 %558
  %560 = vrot.lane.b32.xlu0 %v291, 112
  %v561 = vpop.permute.xlu0 %560
  %562 = vrot.lane.b32.xlu0 %v292, 112
  %v563 = vpop.permute.xlu0 %562
  %564 = vrot.lane.b32.xlu0 %v293, 112
  %v565 = vpop.permute.xlu0 %564
  %566 = vrot.lane.b32.xlu0 %v294, 112
  %v567 = vpop.permute.xlu0 %566
  %568 = vrot.lane.b32.xlu0 %v295, 112
  %v569 = vpop.permute.xlu0 %568
  %570 = vrot.lane.b32.xlu0 %v296, 112
  %v571 = vpop.permute.xlu0 %570
  %v572 = vsel %vm167, %v541, 0
  %v574 = vsel %vm167, %v543, 0
  %v576 = vsel %vm167, %v545, 0
  %v578 = vsel %vm167, %v547, 0
  %v580 = vsel %vm167, %v549, 0
  %v582 = vsel %vm167, %v551, 0
  %v584 = vsel %vm167, %v553, 0
  %v586 = vsel %vm167, %v555, 0
  %v588 = vsel %vm167, %v557, 0
  %v590 = vsel %vm167, %v559, 0
  %v592 = vsel %vm167, %v561, 0
  %v594 = vsel %vm167, %v563, 0
  %v596 = vsel %vm167, %v565, 0
  %v598 = vsel %vm167, %v567, 0
  %v600 = vsel %vm167, %v569, 0
  %v602 = vsel %vm167, %v571, 0
  %604 = vmatpush.msra.mxu0 0.0
  %605 = vmatpush.msra.mxu0 0.0
  %606 = vmatpush.msra.mxu0 0.0
  %607 = vmatpush.msra.mxu0 0.0
  %608 = vmatpush.msra.mxu0 0.0
  %609 = vmatpush.msra.mxu0 0.0
  %610 = vmatpush.msra.mxu0 0.0
  %611 = vmatpush.msra.mxu0 0.0
  %612 = vmatpush.msra.mxu0 0.0
  %613 = vmatpush.msra.mxu0 0.0
  %614 = vmatpush.msra.mxu0 0.0
  %615 = vmatpush.msra.mxu0 0.0
  %616 = vmatpush.msra.mxu0 0.0
  %617 = vmatpush.msra.mxu0 0.0
  %618 = vmatpush.msra.mxu0 0.0
  %619 = vmatpush.msra.mxu0 %v297
  %620 = vmatmul.f32.gmra.mxu0 %v572
  %v621 = vpop.f32.mrf.mxu0
  %v622 = vadd.f32 0.0, %v621
  %623 = vmatmul.f32.gmra.mxu0 %v574
  %v624 = vpop.f32.mrf.mxu0
  %v625 = vadd.f32 0.0, %v624
  %626 = vmatmul.f32.gmra.mxu0 %v576
  %v627 = vpop.f32.mrf.mxu0
  %v628 = vadd.f32 0.0, %v627
  %629 = vmatmul.f32.gmra.mxu0 %v578
  %v630 = vpop.f32.mrf.mxu0
  %v631 = vadd.f32 0.0, %v630
  %632 = vmatmul.f32.gmra.mxu0 %v580
  %v633 = vpop.f32.mrf.mxu0
  %v634 = vadd.f32 0.0, %v633
  %635 = vmatmul.f32.gmra.mxu0 %v582
  %v636 = vpop.f32.mrf.mxu0
  %v637 = vadd.f32 0.0, %v636
  %638 = vmatmul.f32.gmra.mxu0 %v584
  %v639 = vpop.f32.mrf.mxu0
  %v640 = vadd.f32 0.0, %v639
  %641 = vmatmul.f32.gmra.mxu0 %v586
  %v642 = vpop.f32.mrf.mxu0
  %v643 = vadd.f32 0.0, %v642
  %644 = vmatmul.f32.gmra.mxu0 %v588
  %v645 = vpop.f32.mrf.mxu0
  %v646 = vadd.f32 0.0, %v645
  %647 = vmatmul.f32.gmra.mxu0 %v590
  %v648 = vpop.f32.mrf.mxu0
  %v649 = vadd.f32 0.0, %v648
  %650 = vmatmul.f32.gmra.mxu0 %v592
  %v651 = vpop.f32.mrf.mxu0
  %v652 = vadd.f32 0.0, %v651
  %653 = vmatmul.f32.gmra.mxu0 %v594
  %v654 = vpop.f32.mrf.mxu0
  %v655 = vadd.f32 0.0, %v654
  %656 = vmatmul.f32.gmra.mxu0 %v596
  %v657 = vpop.f32.mrf.mxu0
  %v658 = vadd.f32 0.0, %v657
  %659 = vmatmul.f32.gmra.mxu0 %v598
  %v660 = vpop.f32.mrf.mxu0
  %v661 = vadd.f32 0.0, %v660
  %662 = vmatmul.f32.gmra.mxu0 %v600
  %v663 = vpop.f32.mrf.mxu0
  %v664 = vadd.f32 0.0, %v663
  %665 = vmatmul.f32.gmra.mxu0 %v602
  %v666 = vpop.f32.mrf.mxu0
  %v667 = vadd.f32 0.0, %v666
  %668 = vdwg.mxu0
  %669 = vrot.lane.b32.xlu0 %v281, 104
  %v670 = vpop.permute.xlu0 %669
  %671 = vrot.lane.b32.xlu0 %v282, 104
  %v672 = vpop.permute.xlu0 %671
  %673 = vrot.lane.b32.xlu0 %v283, 104
  %v674 = vpop.permute.xlu0 %673
  %675 = vrot.lane.b32.xlu0 %v284, 104
  %v676 = vpop.permute.xlu0 %675
  %677 = vrot.lane.b32.xlu0 %v285, 104
  %v678 = vpop.permute.xlu0 %677
  %679 = vrot.lane.b32.xlu0 %v286, 104
  %v680 = vpop.permute.xlu0 %679
  %681 = vrot.lane.b32.xlu0 %v287, 104
  %v682 = vpop.permute.xlu0 %681
  %683 = vrot.lane.b32.xlu0 %v288, 104
  %v684 = vpop.permute.xlu0 %683
  %685 = vrot.lane.b32.xlu0 %v289, 104
  %v686 = vpop.permute.xlu0 %685
  %687 = vrot.lane.b32.xlu0 %v290, 104
  %v688 = vpop.permute.xlu0 %687
  %689 = vrot.lane.b32.xlu0 %v291, 104
  %v690 = vpop.permute.xlu0 %689
  %691 = vrot.lane.b32.xlu0 %v292, 104
  %v692 = vpop.permute.xlu0 %691
  %693 = vrot.lane.b32.xlu0 %v293, 104
  %v694 = vpop.permute.xlu0 %693
  %695 = vrot.lane.b32.xlu0 %v294, 104
  %v696 = vpop.permute.xlu0 %695
  %697 = vrot.lane.b32.xlu0 %v295, 104
  %v698 = vpop.permute.xlu0 %697
  %699 = vrot.lane.b32.xlu0 %v296, 104
  %v700 = vpop.permute.xlu0 %699
  %v701 = vsel %vm167, %v670, 0
  %v703 = vsel %vm167, %v672, 0
  %v705 = vsel %vm167, %v674, 0
  %v707 = vsel %vm167, %v676, 0
  %v709 = vsel %vm167, %v678, 0
  %v711 = vsel %vm167, %v680, 0
  %v713 = vsel %vm167, %v682, 0
  %v715 = vsel %vm167, %v684, 0
  %v717 = vsel %vm167, %v686, 0
  %v719 = vsel %vm167, %v688, 0
  %v721 = vsel %vm167, %v690, 0
  %v723 = vsel %vm167, %v692, 0
  %v725 = vsel %vm167, %v694, 0
  %v727 = vsel %vm167, %v696, 0
  %v729 = vsel %vm167, %v698, 0
  %v731 = vsel %vm167, %v700, 0
  %733 = vmatpush.msra.mxu0 0.0
  %734 = vmatpush.msra.mxu0 0.0
  %735 = vmatpush.msra.mxu0 0.0
  %736 = vmatpush.msra.mxu0 0.0
  %737 = vmatpush.msra.mxu0 0.0
  %738 = vmatpush.msra.mxu0 0.0
  %739 = vmatpush.msra.mxu0 0.0
  %740 = vmatpush.msra.mxu0 0.0
  %741 = vmatpush.msra.mxu0 0.0
  %742 = vmatpush.msra.mxu0 0.0
  %743 = vmatpush.msra.mxu0 0.0
  %744 = vmatpush.msra.mxu0 0.0
  %745 = vmatpush.msra.mxu0 0.0
  %746 = vmatpush.msra.mxu0 0.0
  %747 = vmatpush.msra.mxu0 0.0
  %748 = vmatpush.msra.mxu0 %v297
  %749 = vmatmul.f32.gmra.mxu0 %v701
  %v750 = vpop.f32.mrf.mxu0
  %v751 = vadd.f32 0.0, %v750
  %752 = vmatmul.f32.gmra.mxu0 %v703
  %v753 = vpop.f32.mrf.mxu0
  %v754 = vadd.f32 0.0, %v753
  %755 = vmatmul.f32.gmra.mxu0 %v705
  %v756 = vpop.f32.mrf.mxu0
  %v757 = vadd.f32 0.0, %v756
  %758 = vmatmul.f32.gmra.mxu0 %v707
  %v759 = vpop.f32.mrf.mxu0
  %v760 = vadd.f32 0.0, %v759
  %761 = vmatmul.f32.gmra.mxu0 %v709
  %v762 = vpop.f32.mrf.mxu0
  %v763 = vadd.f32 0.0, %v762
  %764 = vmatmul.f32.gmra.mxu0 %v711
  %v765 = vpop.f32.mrf.mxu0
  %v766 = vadd.f32 0.0, %v765
  %767 = vmatmul.f32.gmra.mxu0 %v713
  %v768 = vpop.f32.mrf.mxu0
  %v769 = vadd.f32 0.0, %v768
  %770 = vmatmul.f32.gmra.mxu0 %v715
  %v771 = vpop.f32.mrf.mxu0
  %v772 = vadd.f32 0.0, %v771
  %773 = vmatmul.f32.gmra.mxu0 %v717
  %v774 = vpop.f32.mrf.mxu0
  %v775 = vadd.f32 0.0, %v774
  %776 = vmatmul.f32.gmra.mxu0 %v719
  %v777 = vpop.f32.mrf.mxu0
  %v778 = vadd.f32 0.0, %v777
  %779 = vmatmul.f32.gmra.mxu0 %v721
  %v780 = vpop.f32.mrf.mxu0
  %v781 = vadd.f32 0.0, %v780
  %782 = vmatmul.f32.gmra.mxu0 %v723
  %v783 = vpop.f32.mrf.mxu0
  %v784 = vadd.f32 0.0, %v783
  %785 = vmatmul.f32.gmra.mxu0 %v725
  %v786 = vpop.f32.mrf.mxu0
  %v787 = vadd.f32 0.0, %v786
  %788 = vmatmul.f32.gmra.mxu0 %v727
  %v789 = vpop.f32.mrf.mxu0
  %v790 = vadd.f32 0.0, %v789
  %791 = vmatmul.f32.gmra.mxu0 %v729
  %v792 = vpop.f32.mrf.mxu0
  %v793 = vadd.f32 0.0, %v792
  %794 = vmatmul.f32.gmra.mxu0 %v731
  %v795 = vpop.f32.mrf.mxu0
  %v796 = vadd.f32 0.0, %v795
  %797 = vdwg.mxu0
  %798 = vrot.lane.b32.xlu0 %v281, 96
  %v799 = vpop.permute.xlu0 %798
  %800 = vrot.lane.b32.xlu0 %v282, 96
  %v801 = vpop.permute.xlu0 %800
  %802 = vrot.lane.b32.xlu0 %v283, 96
  %v803 = vpop.permute.xlu0 %802
  %804 = vrot.lane.b32.xlu0 %v284, 96
  %v805 = vpop.permute.xlu0 %804
  %806 = vrot.lane.b32.xlu0 %v285, 96
  %v807 = vpop.permute.xlu0 %806
  %808 = vrot.lane.b32.xlu0 %v286, 96
  %v809 = vpop.permute.xlu0 %808
  %810 = vrot.lane.b32.xlu0 %v287, 96
  %v811 = vpop.permute.xlu0 %810
  %812 = vrot.lane.b32.xlu0 %v288, 96
  %v813 = vpop.permute.xlu0 %812
  %814 = vrot.lane.b32.xlu0 %v289, 96
  %v815 = vpop.permute.xlu0 %814
  %816 = vrot.lane.b32.xlu0 %v290, 96
  %v817 = vpop.permute.xlu0 %816
  %818 = vrot.lane.b32.xlu0 %v291, 96
  %v819 = vpop.permute.xlu0 %818
  %820 = vrot.lane.b32.xlu0 %v292, 96
  %v821 = vpop.permute.xlu0 %820
  %822 = vrot.lane.b32.xlu0 %v293, 96
  %v823 = vpop.permute.xlu0 %822
  %824 = vrot.lane.b32.xlu0 %v294, 96
  %v825 = vpop.permute.xlu0 %824
  %826 = vrot.lane.b32.xlu0 %v295, 96
  %v827 = vpop.permute.xlu0 %826
  %828 = vrot.lane.b32.xlu0 %v296, 96
  %v829 = vpop.permute.xlu0 %828
  %v830 = vsel %vm167, %v799, 0
  %v832 = vsel %vm167, %v801, 0
  %v834 = vsel %vm167, %v803, 0
  %v836 = vsel %vm167, %v805, 0
  %v838 = vsel %vm167, %v807, 0
  %v840 = vsel %vm167, %v809, 0
  %v842 = vsel %vm167, %v811, 0
  %v844 = vsel %vm167, %v813, 0
  %v846 = vsel %vm167, %v815, 0
  %v848 = vsel %vm167, %v817, 0
  %v850 = vsel %vm167, %v819, 0
  %v852 = vsel %vm167, %v821, 0
  %v854 = vsel %vm167, %v823, 0
  %v856 = vsel %vm167, %v825, 0
  %v858 = vsel %vm167, %v827, 0
  %v860 = vsel %vm167, %v829, 0
  %862 = vmatpush.msra.mxu0 0.0
  %863 = vmatpush.msra.mxu0 0.0
  %864 = vmatpush.msra.mxu0 0.0
  %865 = vmatpush.msra.mxu0 0.0
  %866 = vmatpush.msra.mxu0 0.0
  %867 = vmatpush.msra.mxu0 0.0
  %868 = vmatpush.msra.mxu0 0.0
  %869 = vmatpush.msra.mxu0 0.0
  %870 = vmatpush.msra.mxu0 0.0
  %871 = vmatpush.msra.mxu0 0.0
  %872 = vmatpush.msra.mxu0 0.0
  %873 = vmatpush.msra.mxu0 0.0
  %874 = vmatpush.msra.mxu0 0.0
  %875 = vmatpush.msra.mxu0 0.0
  %876 = vmatpush.msra.mxu0 0.0
  %877 = vmatpush.msra.mxu0 %v297
  %878 = vmatmul.f32.gmra.mxu0 %v830
  %v879 = vpop.f32.mrf.mxu0
  %v880 = vadd.f32 0.0, %v879
  %881 = vmatmul.f32.gmra.mxu0 %v832
  %v882 = vpop.f32.mrf.mxu0
  %v883 = vadd.f32 0.0, %v882
  %884 = vmatmul.f32.gmra.mxu0 %v834
  %v885 = vpop.f32.mrf.mxu0
  %v886 = vadd.f32 0.0, %v885
  %887 = vmatmul.f32.gmra.mxu0 %v836
  %v888 = vpop.f32.mrf.mxu0
  %v889 = vadd.f32 0.0, %v888
  %890 = vmatmul.f32.gmra.mxu0 %v838
  %v891 = vpop.f32.mrf.mxu0
  %v892 = vadd.f32 0.0, %v891
  %893 = vmatmul.f32.gmra.mxu0 %v840
  %v894 = vpop.f32.mrf.mxu0
  %v895 = vadd.f32 0.0, %v894
  %896 = vmatmul.f32.gmra.mxu0 %v842
  %v897 = vpop.f32.mrf.mxu0
  %v898 = vadd.f32 0.0, %v897
  %899 = vmatmul.f32.gmra.mxu0 %v844
  %v900 = vpop.f32.mrf.mxu0
  %v901 = vadd.f32 0.0, %v900
  %902 = vmatmul.f32.gmra.mxu0 %v846
  %v903 = vpop.f32.mrf.mxu0
  %v904 = vadd.f32 0.0, %v903
  %905 = vmatmul.f32.gmra.mxu0 %v848
  %v906 = vpop.f32.mrf.mxu0
  %v907 = vadd.f32 0.0, %v906
  %908 = vmatmul.f32.gmra.mxu0 %v850
  %v909 = vpop.f32.mrf.mxu0
  %v910 = vadd.f32 0.0, %v909
  %911 = vmatmul.f32.gmra.mxu0 %v852
  %v912 = vpop.f32.mrf.mxu0
  %v913 = vadd.f32 0.0, %v912
  %914 = vmatmul.f32.gmra.mxu0 %v854
  %v915 = vpop.f32.mrf.mxu0
  %v916 = vadd.f32 0.0, %v915
  %917 = vmatmul.f32.gmra.mxu0 %v856
  %v918 = vpop.f32.mrf.mxu0
  %v919 = vadd.f32 0.0, %v918
  %920 = vmatmul.f32.gmra.mxu0 %v858
  %v921 = vpop.f32.mrf.mxu0
  %v922 = vadd.f32 0.0, %v921
  %923 = vmatmul.f32.gmra.mxu0 %v860
  %v924 = vpop.f32.mrf.mxu0
  %v925 = vadd.f32 0.0, %v924
  %926 = vdwg.mxu0
  %927 = vrot.lane.b32.xlu0 %v281, 88
  %v928 = vpop.permute.xlu0 %927
  %929 = vrot.lane.b32.xlu0 %v282, 88
  %v930 = vpop.permute.xlu0 %929
  %931 = vrot.lane.b32.xlu0 %v283, 88
  %v932 = vpop.permute.xlu0 %931
  %933 = vrot.lane.b32.xlu0 %v284, 88
  %v934 = vpop.permute.xlu0 %933
  %935 = vrot.lane.b32.xlu0 %v285, 88
  %v936 = vpop.permute.xlu0 %935
  %937 = vrot.lane.b32.xlu0 %v286, 88
  %v938 = vpop.permute.xlu0 %937
  %939 = vrot.lane.b32.xlu0 %v287, 88
  %v940 = vpop.permute.xlu0 %939
  %941 = vrot.lane.b32.xlu0 %v288, 88
  %v942 = vpop.permute.xlu0 %941
  %943 = vrot.lane.b32.xlu0 %v289, 88
  %v944 = vpop.permute.xlu0 %943
  %945 = vrot.lane.b32.xlu0 %v290, 88
  %v946 = vpop.permute.xlu0 %945
  %947 = vrot.lane.b32.xlu0 %v291, 88
  %v948 = vpop.permute.xlu0 %947
  %949 = vrot.lane.b32.xlu0 %v292, 88
  %v950 = vpop.permute.xlu0 %949
  %951 = vrot.lane.b32.xlu0 %v293, 88
  %v952 = vpop.permute.xlu0 %951
  %953 = vrot.lane.b32.xlu0 %v294, 88
  %v954 = vpop.permute.xlu0 %953
  %955 = vrot.lane.b32.xlu0 %v295, 88
  %v956 = vpop.permute.xlu0 %955
  %957 = vrot.lane.b32.xlu0 %v296, 88
  %v958 = vpop.permute.xlu0 %957
  %v959 = vsel %vm167, %v928, 0
  %v961 = vsel %vm167, %v930, 0
  %v963 = vsel %vm167, %v932, 0
  %v965 = vsel %vm167, %v934, 0
  %v967 = vsel %vm167, %v936, 0
  %v969 = vsel %vm167, %v938, 0
  %v971 = vsel %vm167, %v940, 0
  %v973 = vsel %vm167, %v942, 0
  %v975 = vsel %vm167, %v944, 0
  %v977 = vsel %vm167, %v946, 0
  %v979 = vsel %vm167, %v948, 0
  %v981 = vsel %vm167, %v950, 0
  %v983 = vsel %vm167, %v952, 0
  %v985 = vsel %vm167, %v954, 0
  %v987 = vsel %vm167, %v956, 0
  %v989 = vsel %vm167, %v958, 0
  %991 = vmatpush.msra.mxu0 0.0
  %992 = vmatpush.msra.mxu0 0.0
  %993 = vmatpush.msra.mxu0 0.0
  %994 = vmatpush.msra.mxu0 0.0
  %995 = vmatpush.msra.mxu0 0.0
  %996 = vmatpush.msra.mxu0 0.0
  %997 = vmatpush.msra.mxu0 0.0
  %998 = vmatpush.msra.mxu0 0.0
  %999 = vmatpush.msra.mxu0 0.0
  %1000 = vmatpush.msra.mxu0 0.0
  %1001 = vmatpush.msra.mxu0 0.0
  %1002 = vmatpush.msra.mxu0 0.0
  %1003 = vmatpush.msra.mxu0 0.0
  %1004 = vmatpush.msra.mxu0 0.0
  %1005 = vmatpush.msra.mxu0 0.0
  %1006 = vmatpush.msra.mxu0 %v297
  %1007 = vmatmul.f32.gmra.mxu0 %v959
  %v1008 = vpop.f32.mrf.mxu0
  %v1009 = vadd.f32 0.0, %v1008
  %1010 = vmatmul.f32.gmra.mxu0 %v961
  %v1011 = vpop.f32.mrf.mxu0
  %v1012 = vadd.f32 0.0, %v1011
  %1013 = vmatmul.f32.gmra.mxu0 %v963
  %v1014 = vpop.f32.mrf.mxu0
  %v1015 = vadd.f32 0.0, %v1014
  %1016 = vmatmul.f32.gmra.mxu0 %v965
  %v1017 = vpop.f32.mrf.mxu0
  %v1018 = vadd.f32 0.0, %v1017
  %1019 = vmatmul.f32.gmra.mxu0 %v967
  %v1020 = vpop.f32.mrf.mxu0
  %v1021 = vadd.f32 0.0, %v1020
  %1022 = vmatmul.f32.gmra.mxu0 %v969
  %v1023 = vpop.f32.mrf.mxu0
  %v1024 = vadd.f32 0.0, %v1023
  %1025 = vmatmul.f32.gmra.mxu0 %v971
  %v1026 = vpop.f32.mrf.mxu0
  %v1027 = vadd.f32 0.0, %v1026
  %1028 = vmatmul.f32.gmra.mxu0 %v973
  %v1029 = vpop.f32.mrf.mxu0
  %v1030 = vadd.f32 0.0, %v1029
  %1031 = vmatmul.f32.gmra.mxu0 %v975
  %v1032 = vpop.f32.mrf.mxu0
  %v1033 = vadd.f32 0.0, %v1032
  %1034 = vmatmul.f32.gmra.mxu0 %v977
  %v1035 = vpop.f32.mrf.mxu0
  %v1036 = vadd.f32 0.0, %v1035
  %1037 = vmatmul.f32.gmra.mxu0 %v979
  %v1038 = vpop.f32.mrf.mxu0
  %v1039 = vadd.f32 0.0, %v1038
  %1040 = vmatmul.f32.gmra.mxu0 %v981
  %v1041 = vpop.f32.mrf.mxu0
  %v1042 = vadd.f32 0.0, %v1041
  %1043 = vmatmul.f32.gmra.mxu0 %v983
  %v1044 = vpop.f32.mrf.mxu0
  %v1045 = vadd.f32 0.0, %v1044
  %1046 = vmatmul.f32.gmra.mxu0 %v985
  %v1047 = vpop.f32.mrf.mxu0
  %v1048 = vadd.f32 0.0, %v1047
  %1049 = vmatmul.f32.gmra.mxu0 %v987
  %v1050 = vpop.f32.mrf.mxu0
  %v1051 = vadd.f32 0.0, %v1050
  %1052 = vmatmul.f32.gmra.mxu0 %v989
  %v1053 = vpop.f32.mrf.mxu0
  %v1054 = vadd.f32 0.0, %v1053
  %1055 = vdwg.mxu0
  %1056 = vrot.lane.b32.xlu0 %v281, 80
  %v1057 = vpop.permute.xlu0 %1056
  %1058 = vrot.lane.b32.xlu0 %v282, 80
  %v1059 = vpop.permute.xlu0 %1058
  %1060 = vrot.lane.b32.xlu0 %v283, 80
  %v1061 = vpop.permute.xlu0 %1060
  %1062 = vrot.lane.b32.xlu0 %v284, 80
  %v1063 = vpop.permute.xlu0 %1062
  %1064 = vrot.lane.b32.xlu0 %v285, 80
  %v1065 = vpop.permute.xlu0 %1064
  %1066 = vrot.lane.b32.xlu0 %v286, 80
  %v1067 = vpop.permute.xlu0 %1066
  %1068 = vrot.lane.b32.xlu0 %v287, 80
  %v1069 = vpop.permute.xlu0 %1068
  %1070 = vrot.lane.b32.xlu0 %v288, 80
  %v1071 = vpop.permute.xlu0 %1070
  %1072 = vrot.lane.b32.xlu0 %v289, 80
  %v1073 = vpop.permute.xlu0 %1072
  %1074 = vrot.lane.b32.xlu0 %v290, 80
  %v1075 = vpop.permute.xlu0 %1074
  %1076 = vrot.lane.b32.xlu0 %v291, 80
  %v1077 = vpop.permute.xlu0 %1076
  %1078 = vrot.lane.b32.xlu0 %v292, 80
  %v1079 = vpop.permute.xlu0 %1078
  %1080 = vrot.lane.b32.xlu0 %v293, 80
  %v1081 = vpop.permute.xlu0 %1080
  %1082 = vrot.lane.b32.xlu0 %v294, 80
  %v1083 = vpop.permute.xlu0 %1082
  %1084 = vrot.lane.b32.xlu0 %v295, 80
  %v1085 = vpop.permute.xlu0 %1084
  %1086 = vrot.lane.b32.xlu0 %v296, 80
  %v1087 = vpop.permute.xlu0 %1086
  %v1088 = vsel %vm167, %v1057, 0
  %v1090 = vsel %vm167, %v1059, 0
  %v1092 = vsel %vm167, %v1061, 0
  %v1094 = vsel %vm167, %v1063, 0
  %v1096 = vsel %vm167, %v1065, 0
  %v1098 = vsel %vm167, %v1067, 0
  %v1100 = vsel %vm167, %v1069, 0
  %v1102 = vsel %vm167, %v1071, 0
  %v1104 = vsel %vm167, %v1073, 0
  %v1106 = vsel %vm167, %v1075, 0
  %v1108 = vsel %vm167, %v1077, 0
  %v1110 = vsel %vm167, %v1079, 0
  %v1112 = vsel %vm167, %v1081, 0
  %v1114 = vsel %vm167, %v1083, 0
  %v1116 = vsel %vm167, %v1085, 0
  %v1118 = vsel %vm167, %v1087, 0
  %1120 = vmatpush.msra.mxu0 0.0
  %1121 = vmatpush.msra.mxu0 0.0
  %1122 = vmatpush.msra.mxu0 0.0
  %1123 = vmatpush.msra.mxu0 0.0
  %1124 = vmatpush.msra.mxu0 0.0
  %1125 = vmatpush.msra.mxu0 0.0
  %1126 = vmatpush.msra.mxu0 0.0
  %1127 = vmatpush.msra.mxu0 0.0
  %1128 = vmatpush.msra.mxu0 0.0
  %1129 = vmatpush.msra.mxu0 0.0
  %1130 = vmatpush.msra.mxu0 0.0
  %1131 = vmatpush.msra.mxu0 0.0
  %1132 = vmatpush.msra.mxu0 0.0
  %1133 = vmatpush.msra.mxu0 0.0
  %1134 = vmatpush.msra.mxu0 0.0
  %1135 = vmatpush.msra.mxu0 %v297
  %1136 = vmatmul.f32.gmra.mxu0 %v1088
  %v1137 = vpop.f32.mrf.mxu0
  %v1138 = vadd.f32 0.0, %v1137
  %1139 = vmatmul.f32.gmra.mxu0 %v1090
  %v1140 = vpop.f32.mrf.mxu0
  %v1141 = vadd.f32 0.0, %v1140
  %1142 = vmatmul.f32.gmra.mxu0 %v1092
  %v1143 = vpop.f32.mrf.mxu0
  %v1144 = vadd.f32 0.0, %v1143
  %1145 = vmatmul.f32.gmra.mxu0 %v1094
  %v1146 = vpop.f32.mrf.mxu0
  %v1147 = vadd.f32 0.0, %v1146
  %1148 = vmatmul.f32.gmra.mxu0 %v1096
  %v1149 = vpop.f32.mrf.mxu0
  %v1150 = vadd.f32 0.0, %v1149
  %1151 = vmatmul.f32.gmra.mxu0 %v1098
  %v1152 = vpop.f32.mrf.mxu0
  %v1153 = vadd.f32 0.0, %v1152
  %1154 = vmatmul.f32.gmra.mxu0 %v1100
  %v1155 = vpop.f32.mrf.mxu0
  %v1156 = vadd.f32 0.0, %v1155
  %1157 = vmatmul.f32.gmra.mxu0 %v1102
  %v1158 = vpop.f32.mrf.mxu0
  %v1159 = vadd.f32 0.0, %v1158
  %1160 = vmatmul.f32.gmra.mxu0 %v1104
  %v1161 = vpop.f32.mrf.mxu0
  %v1162 = vadd.f32 0.0, %v1161
  %1163 = vmatmul.f32.gmra.mxu0 %v1106
  %v1164 = vpop.f32.mrf.mxu0
  %v1165 = vadd.f32 0.0, %v1164
  %1166 = vmatmul.f32.gmra.mxu0 %v1108
  %v1167 = vpop.f32.mrf.mxu0
  %v1168 = vadd.f32 0.0, %v1167
  %1169 = vmatmul.f32.gmra.mxu0 %v1110
  %v1170 = vpop.f32.mrf.mxu0
  %v1171 = vadd.f32 0.0, %v1170
  %1172 = vmatmul.f32.gmra.mxu0 %v1112
  %v1173 = vpop.f32.mrf.mxu0
  %v1174 = vadd.f32 0.0, %v1173
  %1175 = vmatmul.f32.gmra.mxu0 %v1114
  %v1176 = vpop.f32.mrf.mxu0
  %v1177 = vadd.f32 0.0, %v1176
  %1178 = vmatmul.f32.gmra.mxu0 %v1116
  %v1179 = vpop.f32.mrf.mxu0
  %v1180 = vadd.f32 0.0, %v1179
  %1181 = vmatmul.f32.gmra.mxu0 %v1118
  %v1182 = vpop.f32.mrf.mxu0
  %v1183 = vadd.f32 0.0, %v1182
  %1184 = vdwg.mxu0
  %1185 = vrot.lane.b32.xlu0 %v281, 72
  %v1186 = vpop.permute.xlu0 %1185
  %1187 = vrot.lane.b32.xlu0 %v282, 72
  %v1188 = vpop.permute.xlu0 %1187
  %1189 = vrot.lane.b32.xlu0 %v283, 72
  %v1190 = vpop.permute.xlu0 %1189
  %1191 = vrot.lane.b32.xlu0 %v284, 72
  %v1192 = vpop.permute.xlu0 %1191
  %1193 = vrot.lane.b32.xlu0 %v285, 72
  %v1194 = vpop.permute.xlu0 %1193
  %1195 = vrot.lane.b32.xlu0 %v286, 72
  %v1196 = vpop.permute.xlu0 %1195
  %1197 = vrot.lane.b32.xlu0 %v287, 72
  %v1198 = vpop.permute.xlu0 %1197
  %1199 = vrot.lane.b32.xlu0 %v288, 72
  %v1200 = vpop.permute.xlu0 %1199
  %1201 = vrot.lane.b32.xlu0 %v289, 72
  %v1202 = vpop.permute.xlu0 %1201
  %1203 = vrot.lane.b32.xlu0 %v290, 72
  %v1204 = vpop.permute.xlu0 %1203
  %1205 = vrot.lane.b32.xlu0 %v291, 72
  %v1206 = vpop.permute.xlu0 %1205
  %1207 = vrot.lane.b32.xlu0 %v292, 72
  %v1208 = vpop.permute.xlu0 %1207
  %1209 = vrot.lane.b32.xlu0 %v293, 72
  %v1210 = vpop.permute.xlu0 %1209
  %1211 = vrot.lane.b32.xlu0 %v294, 72
  %v1212 = vpop.permute.xlu0 %1211
  %1213 = vrot.lane.b32.xlu0 %v295, 72
  %v1214 = vpop.permute.xlu0 %1213
  %1215 = vrot.lane.b32.xlu0 %v296, 72
  %v1216 = vpop.permute.xlu0 %1215
  %v1217 = vsel %vm167, %v1186, 0
  %v1219 = vsel %vm167, %v1188, 0
  %v1221 = vsel %vm167, %v1190, 0
  %v1223 = vsel %vm167, %v1192, 0
  %v1225 = vsel %vm167, %v1194, 0
  %v1227 = vsel %vm167, %v1196, 0
  %v1229 = vsel %vm167, %v1198, 0
  %v1231 = vsel %vm167, %v1200, 0
  %v1233 = vsel %vm167, %v1202, 0
  %v1235 = vsel %vm167, %v1204, 0
  %v1237 = vsel %vm167, %v1206, 0
  %v1239 = vsel %vm167, %v1208, 0
  %v1241 = vsel %vm167, %v1210, 0
  %v1243 = vsel %vm167, %v1212, 0
  %v1245 = vsel %vm167, %v1214, 0
  %v1247 = vsel %vm167, %v1216, 0
  %1249 = vmatpush.msra.mxu0 0.0
  %1250 = vmatpush.msra.mxu0 0.0
  %1251 = vmatpush.msra.mxu0 0.0
  %1252 = vmatpush.msra.mxu0 0.0
  %1253 = vmatpush.msra.mxu0 0.0
  %1254 = vmatpush.msra.mxu0 0.0
  %1255 = vmatpush.msra.mxu0 0.0
  %1256 = vmatpush.msra.mxu0 0.0
  %1257 = vmatpush.msra.mxu0 0.0
  %1258 = vmatpush.msra.mxu0 0.0
  %1259 = vmatpush.msra.mxu0 0.0
  %1260 = vmatpush.msra.mxu0 0.0
  %1261 = vmatpush.msra.mxu0 0.0
  %1262 = vmatpush.msra.mxu0 0.0
  %1263 = vmatpush.msra.mxu0 0.0
  %1264 = vmatpush.msra.mxu0 %v297
  %1265 = vmatmul.f32.gmra.mxu0 %v1217
  %v1266 = vpop.f32.mrf.mxu0
  %v1267 = vadd.f32 0.0, %v1266
  %1268 = vmatmul.f32.gmra.mxu0 %v1219
  %v1269 = vpop.f32.mrf.mxu0
  %v1270 = vadd.f32 0.0, %v1269
  %1271 = vmatmul.f32.gmra.mxu0 %v1221
  %v1272 = vpop.f32.mrf.mxu0
  %v1273 = vadd.f32 0.0, %v1272
  %1274 = vmatmul.f32.gmra.mxu0 %v1223
  %v1275 = vpop.f32.mrf.mxu0
  %v1276 = vadd.f32 0.0, %v1275
  %1277 = vmatmul.f32.gmra.mxu0 %v1225
  %v1278 = vpop.f32.mrf.mxu0
  %v1279 = vadd.f32 0.0, %v1278
  %1280 = vmatmul.f32.gmra.mxu0 %v1227
  %v1281 = vpop.f32.mrf.mxu0
  %v1282 = vadd.f32 0.0, %v1281
  %1283 = vmatmul.f32.gmra.mxu0 %v1229
  %v1284 = vpop.f32.mrf.mxu0
  %v1285 = vadd.f32 0.0, %v1284
  %1286 = vmatmul.f32.gmra.mxu0 %v1231
  %v1287 = vpop.f32.mrf.mxu0
  %v1288 = vadd.f32 0.0, %v1287
  %1289 = vmatmul.f32.gmra.mxu0 %v1233
  %v1290 = vpop.f32.mrf.mxu0
  %v1291 = vadd.f32 0.0, %v1290
  %1292 = vmatmul.f32.gmra.mxu0 %v1235
  %v1293 = vpop.f32.mrf.mxu0
  %v1294 = vadd.f32 0.0, %v1293
  %1295 = vmatmul.f32.gmra.mxu0 %v1237
  %v1296 = vpop.f32.mrf.mxu0
  %v1297 = vadd.f32 0.0, %v1296
  %1298 = vmatmul.f32.gmra.mxu0 %v1239
  %v1299 = vpop.f32.mrf.mxu0
  %v1300 = vadd.f32 0.0, %v1299
  %1301 = vmatmul.f32.gmra.mxu0 %v1241
  %v1302 = vpop.f32.mrf.mxu0
  %v1303 = vadd.f32 0.0, %v1302
  %1304 = vmatmul.f32.gmra.mxu0 %v1243
  %v1305 = vpop.f32.mrf.mxu0
  %v1306 = vadd.f32 0.0, %v1305
  %1307 = vmatmul.f32.gmra.mxu0 %v1245
  %v1308 = vpop.f32.mrf.mxu0
  %v1309 = vadd.f32 0.0, %v1308
  %1310 = vmatmul.f32.gmra.mxu0 %v1247
  %v1311 = vpop.f32.mrf.mxu0
  %v1312 = vadd.f32 0.0, %v1311
  %1313 = vdwg.mxu0
  %1330 = vrot.lane.b32.xlu0 %v493, 8
  %v1331 = vpop.permute.xlu0 %1330
  %1332 = vrot.lane.b32.xlu0 %v496, 8
  %v1333 = vpop.permute.xlu0 %1332
  %1334 = vrot.lane.b32.xlu0 %v499, 8
  %v1335 = vpop.permute.xlu0 %1334
  %1336 = vrot.lane.b32.xlu0 %v502, 8
  %v1337 = vpop.permute.xlu0 %1336
  %1338 = vrot.lane.b32.xlu0 %v505, 8
  %v1339 = vpop.permute.xlu0 %1338
  %1340 = vrot.lane.b32.xlu0 %v508, 8
  %v1341 = vpop.permute.xlu0 %1340
  %1342 = vrot.lane.b32.xlu0 %v511, 8
  %v1343 = vpop.permute.xlu0 %1342
  %1344 = vrot.lane.b32.xlu0 %v514, 8
  %v1345 = vpop.permute.xlu0 %1344
  %1346 = vrot.lane.b32.xlu0 %v517, 8
  %v1347 = vpop.permute.xlu0 %1346
  %1348 = vrot.lane.b32.xlu0 %v520, 8
  %v1349 = vpop.permute.xlu0 %1348
  %1350 = vrot.lane.b32.xlu0 %v523, 8
  %v1351 = vpop.permute.xlu0 %1350
  %1352 = vrot.lane.b32.xlu0 %v526, 8
  %v1353 = vpop.permute.xlu0 %1352
  %1354 = vrot.lane.b32.xlu0 %v529, 8
  %v1355 = vpop.permute.xlu0 %1354
  %1356 = vrot.lane.b32.xlu0 %v532, 8
  %v1357 = vpop.permute.xlu0 %1356
  %1358 = vrot.lane.b32.xlu0 %v535, 8
  %v1359 = vpop.permute.xlu0 %1358
  %1360 = vrot.lane.b32.xlu0 %v538, 8
  %v1361 = vpop.permute.xlu0 %1360
  %1394 = vrot.lane.b32.xlu0 %v622, 16
  %v1395 = vpop.permute.xlu0 %1394
  %1396 = vrot.lane.b32.xlu0 %v625, 16
  %v1397 = vpop.permute.xlu0 %1396
  %1398 = vrot.lane.b32.xlu0 %v628, 16
  %v1399 = vpop.permute.xlu0 %1398
  %1400 = vrot.lane.b32.xlu0 %v631, 16
  %v1401 = vpop.permute.xlu0 %1400
  %1402 = vrot.lane.b32.xlu0 %v634, 16
  %v1403 = vpop.permute.xlu0 %1402
  %1404 = vrot.lane.b32.xlu0 %v637, 16
  %v1405 = vpop.permute.xlu0 %1404
  %1406 = vrot.lane.b32.xlu0 %v640, 16
  %v1407 = vpop.permute.xlu0 %1406
  %1408 = vrot.lane.b32.xlu0 %v643, 16
  %v1409 = vpop.permute.xlu0 %1408
  %1410 = vrot.lane.b32.xlu0 %v646, 16
  %v1411 = vpop.permute.xlu0 %1410
  %1412 = vrot.lane.b32.xlu0 %v649, 16
  %v1413 = vpop.permute.xlu0 %1412
  %1414 = vrot.lane.b32.xlu0 %v652, 16
  %v1415 = vpop.permute.xlu0 %1414
  %1416 = vrot.lane.b32.xlu0 %v655, 16
  %v1417 = vpop.permute.xlu0 %1416
  %1418 = vrot.lane.b32.xlu0 %v658, 16
  %v1419 = vpop.permute.xlu0 %1418
  %1420 = vrot.lane.b32.xlu0 %v661, 16
  %v1421 = vpop.permute.xlu0 %1420
  %1422 = vrot.lane.b32.xlu0 %v664, 16
  %v1423 = vpop.permute.xlu0 %1422
  %1424 = vrot.lane.b32.xlu0 %v667, 16
  %v1425 = vpop.permute.xlu0 %1424
  %1458 = vrot.lane.b32.xlu0 %v751, 24
  %v1459 = vpop.permute.xlu0 %1458
  %1460 = vrot.lane.b32.xlu0 %v754, 24
  %v1461 = vpop.permute.xlu0 %1460
  %1462 = vrot.lane.b32.xlu0 %v757, 24
  %v1463 = vpop.permute.xlu0 %1462
  %1464 = vrot.lane.b32.xlu0 %v760, 24
  %v1465 = vpop.permute.xlu0 %1464
  %1466 = vrot.lane.b32.xlu0 %v763, 24
  %v1467 = vpop.permute.xlu0 %1466
  %1468 = vrot.lane.b32.xlu0 %v766, 24
  %v1469 = vpop.permute.xlu0 %1468
  %1470 = vrot.lane.b32.xlu0 %v769, 24
  %v1471 = vpop.permute.xlu0 %1470
  %1472 = vrot.lane.b32.xlu0 %v772, 24
  %v1473 = vpop.permute.xlu0 %1472
  %1474 = vrot.lane.b32.xlu0 %v775, 24
  %v1475 = vpop.permute.xlu0 %1474
  %1476 = vrot.lane.b32.xlu0 %v778, 24
  %v1477 = vpop.permute.xlu0 %1476
  %1478 = vrot.lane.b32.xlu0 %v781, 24
  %v1479 = vpop.permute.xlu0 %1478
  %1480 = vrot.lane.b32.xlu0 %v784, 24
  %v1481 = vpop.permute.xlu0 %1480
  %1482 = vrot.lane.b32.xlu0 %v787, 24
  %v1483 = vpop.permute.xlu0 %1482
  %1484 = vrot.lane.b32.xlu0 %v790, 24
  %v1485 = vpop.permute.xlu0 %1484
  %1486 = vrot.lane.b32.xlu0 %v793, 24
  %v1487 = vpop.permute.xlu0 %1486
  %1488 = vrot.lane.b32.xlu0 %v796, 24
  %v1489 = vpop.permute.xlu0 %1488
  %1522 = vrot.lane.b32.xlu0 %v880, 32
  %v1523 = vpop.permute.xlu0 %1522
  %1524 = vrot.lane.b32.xlu0 %v883, 32
  %v1525 = vpop.permute.xlu0 %1524
  %1526 = vrot.lane.b32.xlu0 %v886, 32
  %v1527 = vpop.permute.xlu0 %1526
  %1528 = vrot.lane.b32.xlu0 %v889, 32
  %v1529 = vpop.permute.xlu0 %1528
  %1530 = vrot.lane.b32.xlu0 %v892, 32
  %v1531 = vpop.permute.xlu0 %1530
  %1532 = vrot.lane.b32.xlu0 %v895, 32
  %v1533 = vpop.permute.xlu0 %1532
  %1534 = vrot.lane.b32.xlu0 %v898, 32
  %v1535 = vpop.permute.xlu0 %1534
  %1536 = vrot.lane.b32.xlu0 %v901, 32
  %v1537 = vpop.permute.xlu0 %1536
  %1538 = vrot.lane.b32.xlu0 %v904, 32
  %v1539 = vpop.permute.xlu0 %1538
  %1540 = vrot.lane.b32.xlu0 %v907, 32
  %v1541 = vpop.permute.xlu0 %1540
  %1542 = vrot.lane.b32.xlu0 %v910, 32
  %v1543 = vpop.permute.xlu0 %1542
  %1544 = vrot.lane.b32.xlu0 %v913, 32
  %v1545 = vpop.permute.xlu0 %1544
  %1546 = vrot.lane.b32.xlu0 %v916, 32
  %v1547 = vpop.permute.xlu0 %1546
  %1548 = vrot.lane.b32.xlu0 %v919, 32
  %v1549 = vpop.permute.xlu0 %1548
  %1550 = vrot.lane.b32.xlu0 %v922, 32
  %v1551 = vpop.permute.xlu0 %1550
  %1552 = vrot.lane.b32.xlu0 %v925, 32
  %v1553 = vpop.permute.xlu0 %1552
  %1586 = vrot.lane.b32.xlu0 %v1009, 40
  %v1587 = vpop.permute.xlu0 %1586
  %1588 = vrot.lane.b32.xlu0 %v1012, 40
  %v1589 = vpop.permute.xlu0 %1588
  %1590 = vrot.lane.b32.xlu0 %v1015, 40
  %v1591 = vpop.permute.xlu0 %1590
  %1592 = vrot.lane.b32.xlu0 %v1018, 40
  %v1593 = vpop.permute.xlu0 %1592
  %1594 = vrot.lane.b32.xlu0 %v1021, 40
  %v1595 = vpop.permute.xlu0 %1594
  %1596 = vrot.lane.b32.xlu0 %v1024, 40
  %v1597 = vpop.permute.xlu0 %1596
  %1598 = vrot.lane.b32.xlu0 %v1027, 40
  %v1599 = vpop.permute.xlu0 %1598
  %1600 = vrot.lane.b32.xlu0 %v1030, 40
  %v1601 = vpop.permute.xlu0 %1600
  %1602 = vrot.lane.b32.xlu0 %v1033, 40
  %v1603 = vpop.permute.xlu0 %1602
  %1604 = vrot.lane.b32.xlu0 %v1036, 40
  %v1605 = vpop.permute.xlu0 %1604
  %1606 = vrot.lane.b32.xlu0 %v1039, 40
  %v1607 = vpop.permute.xlu0 %1606
  %1608 = vrot.lane.b32.xlu0 %v1042, 40
  %v1609 = vpop.permute.xlu0 %1608
  %1610 = vrot.lane.b32.xlu0 %v1045, 40
  %v1611 = vpop.permute.xlu0 %1610
  %1612 = vrot.lane.b32.xlu0 %v1048, 40
  %v1613 = vpop.permute.xlu0 %1612
  %1614 = vrot.lane.b32.xlu0 %v1051, 40
  %v1615 = vpop.permute.xlu0 %1614
  %1616 = vrot.lane.b32.xlu0 %v1054, 40
  %v1617 = vpop.permute.xlu0 %1616
  %1650 = vrot.lane.b32.xlu0 %v1138, 48
  %v1651 = vpop.permute.xlu0 %1650
  %1652 = vrot.lane.b32.xlu0 %v1141, 48
  %v1653 = vpop.permute.xlu0 %1652
  %1654 = vrot.lane.b32.xlu0 %v1144, 48
  %v1655 = vpop.permute.xlu0 %1654
  %1656 = vrot.lane.b32.xlu0 %v1147, 48
  %v1657 = vpop.permute.xlu0 %1656
  %1658 = vrot.lane.b32.xlu0 %v1150, 48
  %v1659 = vpop.permute.xlu0 %1658
  %1660 = vrot.lane.b32.xlu0 %v1153, 48
  %v1661 = vpop.permute.xlu0 %1660
  %1662 = vrot.lane.b32.xlu0 %v1156, 48
  %v1663 = vpop.permute.xlu0 %1662
  %1664 = vrot.lane.b32.xlu0 %v1159, 48
  %v1665 = vpop.permute.xlu0 %1664
  %1666 = vrot.lane.b32.xlu0 %v1162, 48
  %v1667 = vpop.permute.xlu0 %1666
  %1668 = vrot.lane.b32.xlu0 %v1165, 48
  %v1669 = vpop.permute.xlu0 %1668
  %1670 = vrot.lane.b32.xlu0 %v1168, 48
  %v1671 = vpop.permute.xlu0 %1670
  %1672 = vrot.lane.b32.xlu0 %v1171, 48
  %v1673 = vpop.permute.xlu0 %1672
  %1674 = vrot.lane.b32.xlu0 %v1174, 48
  %v1675 = vpop.permute.xlu0 %1674
  %1676 = vrot.lane.b32.xlu0 %v1177, 48
  %v1677 = vpop.permute.xlu0 %1676
  %1678 = vrot.lane.b32.xlu0 %v1180, 48
  %v1679 = vpop.permute.xlu0 %1678
  %1680 = vrot.lane.b32.xlu0 %v1183, 48
  %v1681 = vpop.permute.xlu0 %1680
  %1714 = vrot.lane.b32.xlu0 %v1267, 56
  %v1715 = vpop.permute.xlu0 %1714
  %1716 = vrot.lane.b32.xlu0 %v1270, 56
  %v1717 = vpop.permute.xlu0 %1716
  %1718 = vrot.lane.b32.xlu0 %v1273, 56
  %v1719 = vpop.permute.xlu0 %1718
  %1720 = vrot.lane.b32.xlu0 %v1276, 56
  %v1721 = vpop.permute.xlu0 %1720
  %1722 = vrot.lane.b32.xlu0 %v1279, 56
  %v1723 = vpop.permute.xlu0 %1722
  %1724 = vrot.lane.b32.xlu0 %v1282, 56
  %v1725 = vpop.permute.xlu0 %1724
  %1726 = vrot.lane.b32.xlu0 %v1285, 56
  %v1727 = vpop.permute.xlu0 %1726
  %1728 = vrot.lane.b32.xlu0 %v1288, 56
  %v1729 = vpop.permute.xlu0 %1728
  %1730 = vrot.lane.b32.xlu0 %v1291, 56
  %v1731 = vpop.permute.xlu0 %1730
  %1732 = vrot.lane.b32.xlu0 %v1294, 56
  %v1733 = vpop.permute.xlu0 %1732
  %1734 = vrot.lane.b32.xlu0 %v1297, 56
  %v1735 = vpop.permute.xlu0 %1734
  %1736 = vrot.lane.b32.xlu0 %v1300, 56
  %v1737 = vpop.permute.xlu0 %1736
  %1738 = vrot.lane.b32.xlu0 %v1303, 56
  %v1739 = vpop.permute.xlu0 %1738
  %1740 = vrot.lane.b32.xlu0 %v1306, 56
  %v1741 = vpop.permute.xlu0 %1740
  %1742 = vrot.lane.b32.xlu0 %v1309, 56
  %v1743 = vpop.permute.xlu0 %1742
  %1744 = vrot.lane.b32.xlu0 %v1312, 56
  %v1745 = vpop.permute.xlu0 %1744
  %v1762 = vsel %vm167, %v364, %v1331
  %v1763 = vsel %vm167, %v367, %v1333
  %v1764 = vsel %vm167, %v370, %v1335
  %v1765 = vsel %vm167, %v373, %v1337
  %v1766 = vsel %vm167, %v376, %v1339
  %v1767 = vsel %vm167, %v379, %v1341
  %v1768 = vsel %vm167, %v382, %v1343
  %v1769 = vsel %vm167, %v385, %v1345
  %v1770 = vsel %vm167, %v388, %v1347
  %v1771 = vsel %vm167, %v391, %v1349
  %v1772 = vsel %vm167, %v394, %v1351
  %v1773 = vsel %vm167, %v397, %v1353
  %v1774 = vsel %vm167, %v400, %v1355
  %v1775 = vsel %vm167, %v403, %v1357
  %v1776 = vsel %vm167, %v406, %v1359
  %v1777 = vsel %vm167, %v409, %v1361
  %v1778 = vsel %vm48, %v1762, %v1395
  %v1779 = vsel %vm48, %v1763, %v1397
  %v1780 = vsel %vm48, %v1764, %v1399
  %v1781 = vsel %vm48, %v1765, %v1401
  %v1782 = vsel %vm48, %v1766, %v1403
  %v1783 = vsel %vm48, %v1767, %v1405
  %v1784 = vsel %vm48, %v1768, %v1407
  %v1785 = vsel %vm48, %v1769, %v1409
  %v1786 = vsel %vm48, %v1770, %v1411
  %v1787 = vsel %vm48, %v1771, %v1413
  %v1788 = vsel %vm48, %v1772, %v1415
  %v1789 = vsel %vm48, %v1773, %v1417
  %v1790 = vsel %vm48, %v1774, %v1419
  %v1791 = vsel %vm48, %v1775, %v1421
  %v1792 = vsel %vm48, %v1776, %v1423
  %v1793 = vsel %vm48, %v1777, %v1425
  %vm1794 = vcmask 195584
  %v1795 = vsel %vm1794, %v1778, %v1459
  %v1796 = vsel %vm1794, %v1779, %v1461
  %v1797 = vsel %vm1794, %v1780, %v1463
  %v1798 = vsel %vm1794, %v1781, %v1465
  %v1799 = vsel %vm1794, %v1782, %v1467
  %v1800 = vsel %vm1794, %v1783, %v1469
  %v1801 = vsel %vm1794, %v1784, %v1471
  %v1802 = vsel %vm1794, %v1785, %v1473
  %v1803 = vsel %vm1794, %v1786, %v1475
  %v1804 = vsel %vm1794, %v1787, %v1477
  %v1805 = vsel %vm1794, %v1788, %v1479
  %v1806 = vsel %vm1794, %v1789, %v1481
  %v1807 = vsel %vm1794, %v1790, %v1483
  %v1808 = vsel %vm1794, %v1791, %v1485
  %v1809 = vsel %vm1794, %v1792, %v1487
  %v1810 = vsel %vm1794, %v1793, %v1489
  %vm1811 = vcmask 261120
  %v1812 = vsel %vm1811, %v1795, %v1523
  %v1813 = vsel %vm1811, %v1796, %v1525
  %v1814 = vsel %vm1811, %v1797, %v1527
  %v1815 = vsel %vm1811, %v1798, %v1529
  %v1816 = vsel %vm1811, %v1799, %v1531
  %v1817 = vsel %vm1811, %v1800, %v1533
  %v1818 = vsel %vm1811, %v1801, %v1535
  %v1819 = vsel %vm1811, %v1802, %v1537
  %v1820 = vsel %vm1811, %v1803, %v1539
  %v1821 = vsel %vm1811, %v1804, %v1541
  %v1822 = vsel %vm1811, %v1805, %v1543
  %v1823 = vsel %vm1811, %v1806, %v1545
  %v1824 = vsel %vm1811, %v1807, %v1547
  %v1825 = vsel %vm1811, %v1808, %v1549
  %v1826 = vsel %vm1811, %v1809, %v1551
  %v1827 = vsel %vm1811, %v1810, %v1553
  %vm1828 = vcmask 326656
  %v1829 = vsel %vm1828, %v1812, %v1587
  %v1830 = vsel %vm1828, %v1813, %v1589
  %v1831 = vsel %vm1828, %v1814, %v1591
  %v1832 = vsel %vm1828, %v1815, %v1593
  %v1833 = vsel %vm1828, %v1816, %v1595
  %v1834 = vsel %vm1828, %v1817, %v1597
  %v1835 = vsel %vm1828, %v1818, %v1599
  %v1836 = vsel %vm1828, %v1819, %v1601
  %v1837 = vsel %vm1828, %v1820, %v1603
  %v1838 = vsel %vm1828, %v1821, %v1605
  %v1839 = vsel %vm1828, %v1822, %v1607
  %v1840 = vsel %vm1828, %v1823, %v1609
  %v1841 = vsel %vm1828, %v1824, %v1611
  %v1842 = vsel %vm1828, %v1825, %v1613
  %v1843 = vsel %vm1828, %v1826, %v1615
  %v1844 = vsel %vm1828, %v1827, %v1617
  %vm1845 = vcmask 392192
  %v1846 = vsel %vm1845, %v1829, %v1651
  %v1847 = vsel %vm1845, %v1830, %v1653
  %v1848 = vsel %vm1845, %v1831, %v1655
  %v1849 = vsel %vm1845, %v1832, %v1657
  %v1850 = vsel %vm1845, %v1833, %v1659
  %v1851 = vsel %vm1845, %v1834, %v1661
  %v1852 = vsel %vm1845, %v1835, %v1663
  %v1853 = vsel %vm1845, %v1836, %v1665
  %v1854 = vsel %vm1845, %v1837, %v1667
  %v1855 = vsel %vm1845, %v1838, %v1669
  %v1856 = vsel %vm1845, %v1839, %v1671
  %v1857 = vsel %vm1845, %v1840, %v1673
  %v1858 = vsel %vm1845, %v1841, %v1675
  %v1859 = vsel %vm1845, %v1842, %v1677
  %v1860 = vsel %vm1845, %v1843, %v1679
  %v1861 = vsel %vm1845, %v1844, %v1681
  %vm1862 = vcmask 457728
  %v1863 = vsel %vm1862, %v1846, %v1715
  %v1864 = vsel %vm1862, %v1847, %v1717
  %v1865 = vsel %vm1862, %v1848, %v1719
  %v1866 = vsel %vm1862, %v1849, %v1721
  %v1867 = vsel %vm1862, %v1850, %v1723
  %v1868 = vsel %vm1862, %v1851, %v1725
  %v1869 = vsel %vm1862, %v1852, %v1727
  %v1870 = vsel %vm1862, %v1853, %v1729
  %v1871 = vsel %vm1862, %v1854, %v1731
  %v1872 = vsel %vm1862, %v1855, %v1733
  %v1873 = vsel %vm1862, %v1856, %v1735
  %v1874 = vsel %vm1862, %v1857, %v1737
  %v1875 = vsel %vm1862, %v1858, %v1739
  %v1876 = vsel %vm1862, %v1859, %v1741
  %v1877 = vsel %vm1862, %v1860, %v1743
  %v1878 = vsel %vm1862, %v1861, %v1745
  %v1879 = vadd.f32 %v234, %v1863
  %v1880 = vadd.f32 %v237, %v1864
  %v1881 = vadd.f32 %v240, %v1865
  %v1882 = vadd.f32 %v243, %v1866
  %v1883 = vadd.f32 %v246, %v1867
  %v1884 = vadd.f32 %v249, %v1868
  %v1885 = vadd.f32 %v252, %v1869
  %v1886 = vadd.f32 %v255, %v1870
  %v1887 = vadd.f32 %v258, %v1871
  %v1888 = vadd.f32 %v261, %v1872
  %v1889 = vadd.f32 %v264, %v1873
  %v1890 = vadd.f32 %v267, %v1874
  %v1891 = vadd.f32 %v270, %v1875
  %v1892 = vadd.f32 %v273, %v1876
  %v1893 = vadd.f32 %v276, %v1877
  %v1894 = vadd.f32 %v279, %v1878
  %vm1895 = vcmask 523264
  %1896 = vst.msk [vmem:[%s7] sm:$0xff] %vm1895, %v1879
  %1897 = vst.msk [vmem:[%s7 + $0x8] sm:$0xff] %vm1895, %v1880
  %1898 = vst.msk [vmem:[%s7 + $0x10] sm:$0xff] %vm1895, %v1881
  %1899 = vst.msk [vmem:[%s7 + $0x18] sm:$0xff] %vm1895, %v1882
  %1900 = vst.msk [vmem:[%s7 + $0x20] sm:$0xff] %vm1895, %v1883
  %1901 = vst.msk [vmem:[%s7 + $0x28] sm:$0xff] %vm1895, %v1884
  %1902 = vst.msk [vmem:[%s7 + $0x30] sm:$0xff] %vm1895, %v1885
  %1903 = vst.msk [vmem:[%s7 + $0x38] sm:$0xff] %vm1895, %v1886
  %1904 = vst.msk [vmem:[%s7 + $0x40] sm:$0xff] %vm1895, %v1887
  %1905 = vst.msk [vmem:[%s7 + $0x48] sm:$0xff] %vm1895, %v1888
  %1906 = vst.msk [vmem:[%s7 + $0x50] sm:$0xff] %vm1895, %v1889
  %1907 = vst.msk [vmem:[%s7 + $0x58] sm:$0xff] %vm1895, %v1890
  %1908 = vst.msk [vmem:[%s7 + $0x60] sm:$0xff] %vm1895, %v1891
  %1909 = vst.msk [vmem:[%s7 + $0x68] sm:$0xff] %vm1895, %v1892
  %1910 = vst.msk [vmem:[%s7 + $0x70] sm:$0xff] %vm1895, %v1893
  %1911 = vst.msk [vmem:[%s7 + $0x78] sm:$0xff] %vm1895, %v1894
  // Predicated region
  $region30: #{deup_cat_forward.1} parent=0 // pred_check
    _
  $region31: #{deup_cat_forward.1} parent=0 // pred_check_branch
    %1913 = sbr.rel (0) target = $region33
  $region32: #{deup_cat_forward.1} parent=0 // pred_region
    _
  $region33: #{deup_cat_forward.1} parent=0 // pred_fallthru
    _
  // Predicated region
  $region34: #{deup_cat_forward.1} parent=0 // pred_check
    _
  $region35: #{deup_cat_forward.1} parent=0 // pred_check_branch
    %1915 = sbr.rel (0) target = $region37
  $region36: #{deup_cat_forward.1} parent=0 // pred_region
    _
  $region37: #{deup_cat_forward.1} parent=0 // pred_fallthru
    _

</llo_original>
